<compile_context>
chip_gen: v6e
topology: v6e:2x2x1
jax: 0.10.0
libtpu: 0.0.40
codegen_flags: <defaults>
</compile_context>

<pallas_src>
import jax
import jax.numpy as jnp
from jax.experimental import pallas as pl
from jax.experimental.pallas import tpu as pltpu

_VMEM = pl.BlockSpec(memory_space=pltpu.MemorySpace.VMEM)


# ----------------------------------------------------------------------------
# The fused Pallas kernel: 7 matmuls for the whole batch, nothing leaves VMEM
# ----------------------------------------------------------------------------
def _lenet5_kernel(x_ref, hp1_ref, hp2_ref, t1_ref, c1b_ref, t2_ref, c2b_ref,
                   f1_ref, fb1_ref, w2t_ref, fb2_ref, w3t_ref, fb3_ref,
                   out_ref):
    f32 = jnp.float32
    B = out_ref.shape[0]

    def dot(a, b):
        return jnp.dot(a, b, preferred_element_type=f32)

    def sigmoid(z):
        # One EUP transcendental, exact: sigmoid(z) = 0.5*tanh(z/2) + 0.5.
        return 0.5 * jnp.tanh(0.5 * z) + 0.5

    x = x_ref[...]                                            # (B*32, 32)

    # ---- conv1: one matmul, K merged over the 5 kernel rows -----------------
    # slab1[b*28 + i, kh*32 + w] = x[b*32 + i + kh, w]
    slab1 = jnp.concatenate(
        [jnp.concatenate([x[b * 32 + kh: b * 32 + kh + 28, :]
                          for kh in range(5)], axis=1)
         for b in range(B)], axis=0)                          # (B*28, 160)
    a1 = sigmoid(dot(slab1, t1_ref[...]) + c1b_ref[...])      # (B*28, 168)

    # ---- 2x2 avg-pool, row half (block-diag 0.5 selector); ------------------
    # ---- column half is folded into t2m at pack time ------------------------
    p1 = dot(hp1_ref[...], a1)                                # (B*14, 168)

    # ---- conv2: one matmul, K merged over kernel rows -----------------------
    # slab2[b*10 + i, kh*168 + c] = p1[b*14 + i + kh, c]
    slab2 = jnp.concatenate(
        [jnp.concatenate([p1[b * 14 + kh: b * 14 + kh + 10, :]
                          for kh in range(5)], axis=1)
         for b in range(B)], axis=0)                          # (B*10, 840)
    a2 = sigmoid(dot(slab2, t2_ref[...]) + c2b_ref[...])      # (B*10, 160)

    # ---- pool2 row half (column half folded into f1m) -----------------------
    p2 = dot(hp2_ref[...], a2)                                # (B*5, 160)

    # ---- fc1: whole batch in one matmul --------------------------------------
    # slab3[b, h*160 + c] = p2[b*5 + h, c]
    slab3 = jnp.concatenate(
        [jnp.concatenate([p2[b * 5 + h: b * 5 + h + 1, :]
                          for h in range(5)], axis=1)
         for b in range(B)], axis=0)                          # (B, 800)
    h1 = sigmoid(dot(slab3, f1_ref[...]) + fb1_ref[...])      # (B, 120)

    # ---- fc2 / fc3 -----------------------------------------------------------
    h2 = sigmoid(dot(h1, w2t_ref[...]) + fb2_ref[...])        # (B, 84)
    out_ref[...] = dot(h2, w3t_ref[...]) + fb3_ref[...]       # (B, 10), 1 store


def lenet5_forward(x, pk):
    """x: (B, 1, 32, 32) NCHW float32; pk: pack_params(params)."""
    B = x.shape[0]
    x2 = x.reshape(B * 32, 32).astype(jnp.float32)            # drop C=1, 2-D
    # Block-diagonal row-pool selectors for this (static) batch size.
    eye_b = jnp.eye(B, dtype=jnp.float32)
    hp1 = jnp.kron(eye_b, pk["hp1"])                           # (B*14, B*28)
    hp2 = jnp.kron(eye_b, pk["hp2"])                           # (B*5,  B*10)
    return pl.pallas_call(
        _lenet5_kernel,
        out_shape=jax.ShapeDtypeStruct((B, 10), jnp.float32),
        in_specs=[_VMEM] * 13,
        out_specs=_VMEM,
    )(x2, hp1, hp2, pk["t1m"], pk["c1b"], pk["t2m"], pk["c2b"],
      pk["f1m"], pk["fb1"], pk["w2t"], pk["fb2"], pk["w3t"], pk["fb3"])


# ----------------------------------------------------------------------------
# One-time weight repacking (outside jit; pure layout / exact algebra)
# ----------------------------------------------------------------------------
def _banded_conv_weights(w, w_in, ow):
    """w: (O, C, 5, 5) -> (5, C*w_in, O*ow) with
       T[kh, c*w_in + x, o*ow + j] = w[o, c, kh, x - j] if 0 <= x-j < 5 else 0."""
    O, C, KH, KW = w.shape
    kw = jnp.arange(w_in)[:, None] - jnp.arange(ow)[None, :]      # (w_in, ow)
    valid = ((kw >= 0) & (kw < KW)).astype(jnp.float32)
    g = w[:, :, :, jnp.clip(kw, 0, KW - 1)]                       # (O,C,KH,w_in,ow)
    g = g * valid[None, None, None]
    g = jnp.transpose(g, (2, 1, 3, 0, 4))                         # (KH,C,w_in,O,ow)
    return g.reshape(KH, C * w_in, O * ow).astype(jnp.float32)


def _pool_rows(h):
    """(h//2, h) matrix with 0.5 at [ip, 2ip] and [ip, 2ip+1]."""
    return 0.5 * (jnp.arange(h)[None, :] // 2 ==
                  jnp.arange(h // 2)[:, None]).astype(jnp.float32)


def _pool_cols(c, w):
    """(c*w, c*(w//2)) block-diagonal matrix with 0.5 pooling entries."""
    wo = w // 2
    r = jnp.arange(c * w)
    s = jnp.arange(c * wo)
    hit = (((r[:, None] // w) == (s[None, :] // wo)) &
           (((r[:, None] % w) // 2) == (s[None, :] % wo)))
    return 0.5 * hit.astype(jnp.float32)


def pack_params(p):
    f32 = jnp.float32
    t1 = _banded_conv_weights(p["w1"], w_in=32, ow=28)            # (5, 32, 168)
    t2 = _banded_conv_weights(p["w2"], w_in=14, ow=10)            # (5, 84, 160)
    wp1 = _pool_cols(6, 28)                                       # (168, 84)
    wp2 = _pool_cols(16, 10)                                      # (160, 80)
    # Fold the 0.5 column-pool selectors into the NEXT layer's weights (exact).
    t2f = jnp.einsum("ck,hkn->hcn", wp1, t2)                      # (5, 168, 160)
    f1 = (p["fw1"].reshape(120, 16, 5, 5)                         # [n, c, h, w]
          .transpose(2, 1, 3, 0)                                  # [h, c, w, n]
          .reshape(5, 16 * 5, 120).astype(f32))                   # (5, 80, 120)
    f1f = jnp.einsum("ck,hkn->hcn", wp2, f1)                      # (5, 160, 120)
    return dict(
        # K-merged (single-matmul) weight slabs.
        t1m=t1.reshape(5 * 32, 6 * 28).astype(f32),               # (160, 168)
        c1b=jnp.repeat(p["b1"], 28)[None, :].astype(f32),         # (1, 168)
        t2m=t2f.reshape(5 * 168, 16 * 10).astype(f32),            # (840, 160)
        c2b=jnp.repeat(p["b2"], 10)[None, :].astype(f32),         # (1, 160)
        f1m=f1f.reshape(5 * 160, 120).astype(f32),                # (800, 120)
        fb1=p["fb1"][None, :].astype(f32),
        w2t=p["fw2"].T.astype(f32), fb2=p["fb2"][None, :].astype(f32),
        w3t=p["fw3"].T.astype(f32), fb3=p["fb3"][None, :].astype(f32),
        # Per-image row-pool selectors (batch block-diag built in the wrapper).
        hp1=_pool_rows(28), hp2=_pool_rows(10),                   # (14,28), (5,10)
    )


def init_params(key):
    ks = jax.random.split(key, 10)

    def rn(k, shape, scale):
        return scale * jax.random.normal(k, shape, jnp.float32)

    return dict(
        w1=rn(ks[0], (6, 1, 5, 5), 0.1),   b1=rn(ks[1], (6,), 0.1),
        w2=rn(ks[2], (16, 6, 5, 5), 0.1),  b2=rn(ks[3], (16,), 0.1),
        fw1=rn(ks[4], (120, 400), 0.05),   fb1=rn(ks[5], (120,), 0.05),
        fw2=rn(ks[6], (84, 120), 0.05),    fb2=rn(ks[7], (84,), 0.05),
        fw3=rn(ks[8], (10, 84), 0.05),     fb3=rn(ks[9], (10,), 0.05),
    )


# ----------------------------------------------------------------------------
# Pure-JAX reference (semantics check against the PyTorch module)
# ----------------------------------------------------------------------------
def ref_forward(x, p):
    def conv(x, w, b):
        y = jax.lax.conv_general_dilated(
            x, w, (1, 1), "VALID", dimension_numbers=("NCHW", "OIHW", "NCHW"))
        return jax.nn.sigmoid(y + b[None, :, None, None])

    def pool(x):
        B, C, H, W = x.shape
        return x.reshape(B, C, H // 2, 2, W // 2, 2).mean(axis=(3, 5))

    x = pool(conv(x, p["w1"], p["b1"]))
    x = pool(conv(x, p["w2"], p["b2"]))
    x = x.reshape(x.shape[0], -1)
    x = jax.nn.sigmoid(x @ p["fw1"].T + p["fb1"])
    x = jax.nn.sigmoid(x @ p["fw2"].T + p["fb2"])
    return x @ p["fw3"].T + p["fb3"]


if __name__ == "__main__":
    key = jax.random.PRNGKey(0)
    kx, kp = jax.random.split(key)
    x = jax.random.normal(kx, (2, 1, 32, 32), jnp.float32)   # NCHW, like PyTorch
    params = init_params(kp)
    packed = pack_params(params)                             # one-time repack

    fwd = jax.jit(lenet5_forward)
    out = jax.block_until_ready(fwd(x, packed))
    assert out.shape == (2, 10) and out.dtype == jnp.float32

    ref = jax.block_until_ready(ref_forward(x, params))
    max_err = float(jnp.max(jnp.abs(out - ref)))
    assert max_err < 1e-2, f"mismatch vs reference: {max_err}"

    print("KERNEL_OK")
</pallas_src>

<mosaic_0001>
module attributes {stable_mosaic.version = 11 : i64} {
  func.func @_lenet5_kernel(%arg0: memref<64x32xf32, #tpu.memory_space<vmem>>, %arg1: memref<28x56xf32, #tpu.memory_space<vmem>>, %arg2: memref<10x20xf32, #tpu.memory_space<vmem>>, %arg3: memref<160x168xf32, #tpu.memory_space<vmem>>, %arg4: memref<1x168xf32, #tpu.memory_space<vmem>>, %arg5: memref<840x160xf32, #tpu.memory_space<vmem>>, %arg6: memref<1x160xf32, #tpu.memory_space<vmem>>, %arg7: memref<800x120xf32, #tpu.memory_space<vmem>>, %arg8: memref<1x120xf32, #tpu.memory_space<vmem>>, %arg9: memref<120x84xf32, #tpu.memory_space<vmem>>, %arg10: memref<1x84xf32, #tpu.memory_space<vmem>>, %arg11: memref<84x10xf32, #tpu.memory_space<vmem>>, %arg12: memref<1x10xf32, #tpu.memory_space<vmem>>, %arg13: memref<2x10xf32, #tpu.memory_space<vmem>>) attributes {dimension_semantics = [], scalar_prefetch = 0 : i64, scratch_operands = 0 : i64, tpu.core_type = #tpu.core_type<tc>} {
    %c0 = arith.constant 0 : index
    %c0_0 = arith.constant 0 : index
    %0 = vector.load %arg0[%c0, %c0_0] : memref<64x32xf32, #tpu.memory_space<vmem>>, vector<64x32xf32>
    %1 = vector.extract_strided_slice %0 {offsets = [0, 0], sizes = [28, 32], strides = [1, 1]} : vector<64x32xf32> to vector<28x32xf32>
    %2 = vector.extract_strided_slice %0 {offsets = [1, 0], sizes = [28, 32], strides = [1, 1]} : vector<64x32xf32> to vector<28x32xf32>
    %3 = vector.extract_strided_slice %0 {offsets = [2, 0], sizes = [28, 32], strides = [1, 1]} : vector<64x32xf32> to vector<28x32xf32>
    %4 = vector.extract_strided_slice %0 {offsets = [3, 0], sizes = [28, 32], strides = [1, 1]} : vector<64x32xf32> to vector<28x32xf32>
    %5 = vector.extract_strided_slice %0 {offsets = [4, 0], sizes = [28, 32], strides = [1, 1]} : vector<64x32xf32> to vector<28x32xf32>
    %6 = tpu.concatenate %1, %2, %3, %4, %5 in 1 : vector<28x32xf32>, vector<28x32xf32>, vector<28x32xf32>, vector<28x32xf32>, vector<28x32xf32> -> vector<28x160xf32>
    %7 = vector.extract_strided_slice %0 {offsets = [32, 0], sizes = [28, 32], strides = [1, 1]} : vector<64x32xf32> to vector<28x32xf32>
    %8 = vector.extract_strided_slice %0 {offsets = [33, 0], sizes = [28, 32], strides = [1, 1]} : vector<64x32xf32> to vector<28x32xf32>
    %9 = vector.extract_strided_slice %0 {offsets = [34, 0], sizes = [28, 32], strides = [1, 1]} : vector<64x32xf32> to vector<28x32xf32>
    %10 = vector.extract_strided_slice %0 {offsets = [35, 0], sizes = [28, 32], strides = [1, 1]} : vector<64x32xf32> to vector<28x32xf32>
    %11 = vector.extract_strided_slice %0 {offsets = [36, 0], sizes = [28, 32], strides = [1, 1]} : vector<64x32xf32> to vector<28x32xf32>
    %12 = tpu.concatenate %7, %8, %9, %10, %11 in 1 : vector<28x32xf32>, vector<28x32xf32>, vector<28x32xf32>, vector<28x32xf32>, vector<28x32xf32> -> vector<28x160xf32>
    %13 = tpu.concatenate %6, %12 in 0 : vector<28x160xf32>, vector<28x160xf32> -> vector<56x160xf32>
    %c0_1 = arith.constant 0 : index
    %c0_2 = arith.constant 0 : index
    %14 = vector.load %arg3[%c0_1, %c0_2] : memref<160x168xf32, #tpu.memory_space<vmem>>, vector<160x168xf32>
    %cst = arith.constant dense<0.000000e+00> : vector<56x168xf32>
    %15 = tpu.matmul %13, %14, %cst {dimension_numbers = #tpu.dot_dimension_numbers<[1], [0], [0], [1], [0, 0, 1, 1], [], []>} : vector<56x160xf32>, vector<160x168xf32>, vector<56x168xf32> -> vector<56x168xf32>
    %c0_3 = arith.constant 0 : index
    %c0_4 = arith.constant 0 : index
    %16 = vector.load %arg4[%c0_3, %c0_4] : memref<1x168xf32, #tpu.memory_space<vmem>>, vector<1x168xf32>
    %17 = vector.broadcast %16 : vector<1x168xf32> to vector<56x168xf32>
    %18 = arith.addf %15, %17 : vector<56x168xf32>
    %cst_5 = arith.constant 5.000000e-01 : f32
    %19 = vector.broadcast %cst_5 : f32 to vector<56x168xf32>
    %20 = arith.mulf %19, %18 : vector<56x168xf32>
    %21 = math.tanh %20 : vector<56x168xf32>
    %cst_6 = arith.constant 5.000000e-01 : f32
    %22 = vector.broadcast %cst_6 : f32 to vector<56x168xf32>
    %23 = arith.mulf %22, %21 : vector<56x168xf32>
    %cst_7 = arith.constant 5.000000e-01 : f32
    %24 = vector.broadcast %cst_7 : f32 to vector<56x168xf32>
    %25 = arith.addf %23, %24 : vector<56x168xf32>
    %c0_8 = arith.constant 0 : index
    %c0_9 = arith.constant 0 : index
    %26 = vector.load %arg1[%c0_8, %c0_9] : memref<28x56xf32, #tpu.memory_space<vmem>>, vector<28x56xf32>
    %cst_10 = arith.constant dense<0.000000e+00> : vector<28x168xf32>
    %27 = tpu.matmul %26, %25, %cst_10 {dimension_numbers = #tpu.dot_dimension_numbers<[1], [0], [0], [1], [0, 0, 1, 1], [], []>} : vector<28x56xf32>, vector<56x168xf32>, vector<28x168xf32> -> vector<28x168xf32>
    %28 = vector.extract_strided_slice %27 {offsets = [0, 0], sizes = [10, 168], strides = [1, 1]} : vector<28x168xf32> to vector<10x168xf32>
    %29 = vector.extract_strided_slice %27 {offsets = [1, 0], sizes = [10, 168], strides = [1, 1]} : vector<28x168xf32> to vector<10x168xf32>
    %30 = vector.extract_strided_slice %27 {offsets = [2, 0], sizes = [10, 168], strides = [1, 1]} : vector<28x168xf32> to vector<10x168xf32>
    %31 = vector.extract_strided_slice %27 {offsets = [3, 0], sizes = [10, 168], strides = [1, 1]} : vector<28x168xf32> to vector<10x168xf32>
    %32 = vector.extract_strided_slice %27 {offsets = [4, 0], sizes = [10, 168], strides = [1, 1]} : vector<28x168xf32> to vector<10x168xf32>
    %33 = tpu.concatenate %28, %29, %30, %31, %32 in 1 : vector<10x168xf32>, vector<10x168xf32>, vector<10x168xf32>, vector<10x168xf32>, vector<10x168xf32> -> vector<10x840xf32>
    %34 = vector.extract_strided_slice %27 {offsets = [14, 0], sizes = [10, 168], strides = [1, 1]} : vector<28x168xf32> to vector<10x168xf32>
    %35 = vector.extract_strided_slice %27 {offsets = [15, 0], sizes = [10, 168], strides = [1, 1]} : vector<28x168xf32> to vector<10x168xf32>
    %36 = vector.extract_strided_slice %27 {offsets = [16, 0], sizes = [10, 168], strides = [1, 1]} : vector<28x168xf32> to vector<10x168xf32>
    %37 = vector.extract_strided_slice %27 {offsets = [17, 0], sizes = [10, 168], strides = [1, 1]} : vector<28x168xf32> to vector<10x168xf32>
    %38 = vector.extract_strided_slice %27 {offsets = [18, 0], sizes = [10, 168], strides = [1, 1]} : vector<28x168xf32> to vector<10x168xf32>
    %39 = tpu.concatenate %34, %35, %36, %37, %38 in 1 : vector<10x168xf32>, vector<10x168xf32>, vector<10x168xf32>, vector<10x168xf32>, vector<10x168xf32> -> vector<10x840xf32>
    %40 = tpu.concatenate %33, %39 in 0 : vector<10x840xf32>, vector<10x840xf32> -> vector<20x840xf32>
    %c0_11 = arith.constant 0 : index
    %c0_12 = arith.constant 0 : index
    %41 = vector.load %arg5[%c0_11, %c0_12] : memref<840x160xf32, #tpu.memory_space<vmem>>, vector<840x160xf32>
    %cst_13 = arith.constant dense<0.000000e+00> : vector<20x160xf32>
    %42 = tpu.matmul %40, %41, %cst_13 {dimension_numbers = #tpu.dot_dimension_numbers<[1], [0], [0], [1], [0, 0, 1, 1], [], []>} : vector<20x840xf32>, vector<840x160xf32>, vector<20x160xf32> -> vector<20x160xf32>
    %c0_14 = arith.constant 0 : index
    %c0_15 = arith.constant 0 : index
    %43 = vector.load %arg6[%c0_14, %c0_15] : memref<1x160xf32, #tpu.memory_space<vmem>>, vector<1x160xf32>
    %44 = vector.broadcast %43 : vector<1x160xf32> to vector<20x160xf32>
    %45 = arith.addf %42, %44 : vector<20x160xf32>
    %cst_16 = arith.constant 5.000000e-01 : f32
    %46 = vector.broadcast %cst_16 : f32 to vector<20x160xf32>
    %47 = arith.mulf %46, %45 : vector<20x160xf32>
    %48 = math.tanh %47 : vector<20x160xf32>
    %cst_17 = arith.constant 5.000000e-01 : f32
    %49 = vector.broadcast %cst_17 : f32 to vector<20x160xf32>
    %50 = arith.mulf %49, %48 : vector<20x160xf32>
    %cst_18 = arith.constant 5.000000e-01 : f32
    %51 = vector.broadcast %cst_18 : f32 to vector<20x160xf32>
    %52 = arith.addf %50, %51 : vector<20x160xf32>
    %c0_19 = arith.constant 0 : index
    %c0_20 = arith.constant 0 : index
    %53 = vector.load %arg2[%c0_19, %c0_20] : memref<10x20xf32, #tpu.memory_space<vmem>>, vector<10x20xf32>
    %cst_21 = arith.constant dense<0.000000e+00> : vector<10x160xf32>
    %54 = tpu.matmul %53, %52, %cst_21 {dimension_numbers = #tpu.dot_dimension_numbers<[1], [0], [0], [1], [0, 0, 1, 1], [], []>} : vector<10x20xf32>, vector<20x160xf32>, vector<10x160xf32> -> vector<10x160xf32>
    %55 = vector.extract_strided_slice %54 {offsets = [0, 0], sizes = [1, 160], strides = [1, 1]} : vector<10x160xf32> to vector<1x160xf32>
    %56 = vector.extract_strided_slice %54 {offsets = [1, 0], sizes = [1, 160], strides = [1, 1]} : vector<10x160xf32> to vector<1x160xf32>
    %57 = vector.extract_strided_slice %54 {offsets = [2, 0], sizes = [1, 160], strides = [1, 1]} : vector<10x160xf32> to vector<1x160xf32>
    %58 = vector.extract_strided_slice %54 {offsets = [3, 0], sizes = [1, 160], strides = [1, 1]} : vector<10x160xf32> to vector<1x160xf32>
    %59 = vector.extract_strided_slice %54 {offsets = [4, 0], sizes = [1, 160], strides = [1, 1]} : vector<10x160xf32> to vector<1x160xf32>
    %60 = tpu.concatenate %55, %56, %57, %58, %59 in 1 : vector<1x160xf32>, vector<1x160xf32>, vector<1x160xf32>, vector<1x160xf32>, vector<1x160xf32> -> vector<1x800xf32>
    %61 = vector.extract_strided_slice %54 {offsets = [5, 0], sizes = [1, 160], strides = [1, 1]} : vector<10x160xf32> to vector<1x160xf32>
    %62 = vector.extract_strided_slice %54 {offsets = [6, 0], sizes = [1, 160], strides = [1, 1]} : vector<10x160xf32> to vector<1x160xf32>
    %63 = vector.extract_strided_slice %54 {offsets = [7, 0], sizes = [1, 160], strides = [1, 1]} : vector<10x160xf32> to vector<1x160xf32>
    %64 = vector.extract_strided_slice %54 {offsets = [8, 0], sizes = [1, 160], strides = [1, 1]} : vector<10x160xf32> to vector<1x160xf32>
    %65 = vector.extract_strided_slice %54 {offsets = [9, 0], sizes = [1, 160], strides = [1, 1]} : vector<10x160xf32> to vector<1x160xf32>
    %66 = tpu.concatenate %61, %62, %63, %64, %65 in 1 : vector<1x160xf32>, vector<1x160xf32>, vector<1x160xf32>, vector<1x160xf32>, vector<1x160xf32> -> vector<1x800xf32>
    %67 = tpu.concatenate %60, %66 in 0 : vector<1x800xf32>, vector<1x800xf32> -> vector<2x800xf32>
    %c0_22 = arith.constant 0 : index
    %c0_23 = arith.constant 0 : index
    %68 = vector.load %arg7[%c0_22, %c0_23] : memref<800x120xf32, #tpu.memory_space<vmem>>, vector<800x120xf32>
    %cst_24 = arith.constant dense<0.000000e+00> : vector<2x120xf32>
    %69 = tpu.matmul %67, %68, %cst_24 {dimension_numbers = #tpu.dot_dimension_numbers<[1], [0], [0], [1], [0, 0, 1, 1], [], []>} : vector<2x800xf32>, vector<800x120xf32>, vector<2x120xf32> -> vector<2x120xf32>
    %c0_25 = arith.constant 0 : index
    %c0_26 = arith.constant 0 : index
    %70 = vector.load %arg8[%c0_25, %c0_26] : memref<1x120xf32, #tpu.memory_space<vmem>>, vector<1x120xf32>
    %71 = vector.broadcast %70 : vector<1x120xf32> to vector<2x120xf32>
    %72 = arith.addf %69, %71 : vector<2x120xf32>
    %cst_27 = arith.constant 5.000000e-01 : f32
    %73 = vector.broadcast %cst_27 : f32 to vector<2x120xf32>
    %74 = arith.mulf %73, %72 : vector<2x120xf32>
    %75 = math.tanh %74 : vector<2x120xf32>
    %cst_28 = arith.constant 5.000000e-01 : f32
    %76 = vector.broadcast %cst_28 : f32 to vector<2x120xf32>
    %77 = arith.mulf %76, %75 : vector<2x120xf32>
    %cst_29 = arith.constant 5.000000e-01 : f32
    %78 = vector.broadcast %cst_29 : f32 to vector<2x120xf32>
    %79 = arith.addf %77, %78 : vector<2x120xf32>
    %c0_30 = arith.constant 0 : index
    %c0_31 = arith.constant 0 : index
    %80 = vector.load %arg9[%c0_30, %c0_31] : memref<120x84xf32, #tpu.memory_space<vmem>>, vector<120x84xf32>
    %cst_32 = arith.constant dense<0.000000e+00> : vector<2x84xf32>
    %81 = tpu.matmul %79, %80, %cst_32 {dimension_numbers = #tpu.dot_dimension_numbers<[1], [0], [0], [1], [0, 0, 1, 1], [], []>} : vector<2x120xf32>, vector<120x84xf32>, vector<2x84xf32> -> vector<2x84xf32>
    %c0_33 = arith.constant 0 : index
    %c0_34 = arith.constant 0 : index
    %82 = vector.load %arg10[%c0_33, %c0_34] : memref<1x84xf32, #tpu.memory_space<vmem>>, vector<1x84xf32>
    %83 = vector.broadcast %82 : vector<1x84xf32> to vector<2x84xf32>
    %84 = arith.addf %81, %83 : vector<2x84xf32>
    %cst_35 = arith.constant 5.000000e-01 : f32
    %85 = vector.broadcast %cst_35 : f32 to vector<2x84xf32>
    %86 = arith.mulf %85, %84 : vector<2x84xf32>
    %87 = math.tanh %86 : vector<2x84xf32>
    %cst_36 = arith.constant 5.000000e-01 : f32
    %88 = vector.broadcast %cst_36 : f32 to vector<2x84xf32>
    %89 = arith.mulf %88, %87 : vector<2x84xf32>
    %cst_37 = arith.constant 5.000000e-01 : f32
    %90 = vector.broadcast %cst_37 : f32 to vector<2x84xf32>
    %91 = arith.addf %89, %90 : vector<2x84xf32>
    %c0_38 = arith.constant 0 : index
    %c0_39 = arith.constant 0 : index
    %92 = vector.load %arg11[%c0_38, %c0_39] : memref<84x10xf32, #tpu.memory_space<vmem>>, vector<84x10xf32>
    %cst_40 = arith.constant dense<0.000000e+00> : vector<2x10xf32>
    %93 = tpu.matmul %91, %92, %cst_40 {dimension_numbers = #tpu.dot_dimension_numbers<[1], [0], [0], [1], [0, 0, 1, 1], [], []>} : vector<2x84xf32>, vector<84x10xf32>, vector<2x10xf32> -> vector<2x10xf32>
    %c0_41 = arith.constant 0 : index
    %c0_42 = arith.constant 0 : index
    %94 = vector.load %arg12[%c0_41, %c0_42] : memref<1x10xf32, #tpu.memory_space<vmem>>, vector<1x10xf32>
    %95 = vector.broadcast %94 : vector<1x10xf32> to vector<2x10xf32>
    %96 = arith.addf %93, %95 : vector<2x10xf32>
    %c0_43 = arith.constant 0 : index
    %c0_44 = arith.constant 0 : index
    %97 = vector.load %arg13[%c0_43, %c0_44] : memref<2x10xf32, #tpu.memory_space<vmem>>, vector<2x10xf32>
    tpu.vector_store %arg13[%c0_43, %c0_44], %96 {strides = array<i32>} : memref<2x10xf32, #tpu.memory_space<vmem>>, vector<2x10xf32>,
    return
  }
}

</mosaic_0001>

<llo_original>
// kernel: lenet5_forward.1
$region0: #{lenet5_forward.1}
  #allocation0 [shape = 'u32[]', space=smem, size = 0x4, offset = 0x4, fixed_abs, tag = 'smem constant byte address 0x4 - core index']
  #allocation1 [shape = 'u32[144,128]{1,0:T(1,128)}', space=vmem, size = 0x12000, scoped, tag = 'internal scratch']
  %s0 = inlined_call_operand.vmem [shape: f32[64,32], index: 0, kind: input, shape index: {}]
  %s1 = inlined_call_operand.vmem [shape: f32[28,56], index: 1, kind: input, shape index: {}]
  %s2 = inlined_call_operand.vmem [shape: f32[10,20], index: 2, kind: input, shape index: {}]
  %s3 = inlined_call_operand.vmem [shape: f32[160,168], index: 3, kind: input, shape index: {}]
  %s4 = inlined_call_operand.vmem [shape: f32[1,168], index: 4, kind: input, shape index: {}]
  %s5 = inlined_call_operand.vmem [shape: f32[840,160], index: 5, kind: input, shape index: {}]
  %s6 = inlined_call_operand.vmem [shape: f32[1,160], index: 6, kind: input, shape index: {}]
  %s7 = inlined_call_operand.vmem [shape: f32[800,120], index: 7, kind: input, shape index: {}]
  %s8 = inlined_call_operand.vmem [shape: f32[1,120], index: 8, kind: input, shape index: {}]
  %s9 = inlined_call_operand.vmem [shape: f32[120,84], index: 9, kind: input, shape index: {}]
  %s10 = inlined_call_operand.vmem [shape: f32[1,84], index: 10, kind: input, shape index: {}]
  %s11 = inlined_call_operand.vmem [shape: f32[84,10], index: 11, kind: input, shape index: {}]
  %s12 = inlined_call_operand.vmem [shape: f32[1,10], index: 12, kind: input, shape index: {}]
  %s13 = inlined_call_operand.hbm [shape: f32[2,10], index: 13, kind: output, shape index: {}]
  %s14 = sld [smem:[#allocation0]]
  $region62: #{lenet5_forward.1} parent=0
    _
  %s16 = ssub.s32 1, %s14
  %s17 = scalar_select 0, %s16, %s14
  $region1: #{lenet5_forward.1} parent=0
    #allocation2 [shape = 'u8[1024]{0}', space=vmem, size = 0x400, scoped, tag = 'output window, operand 0, single buffered']
    #allocation3 [shape = 's32[1]{0}', space=sflag, size = 0x4, scoped, tag = 'scoped memory for lenet5_forward.1']
    %18 = vsyncpa [#allocation3], 0
    // Predicated region
    $region2: #{lenet5_forward.1} parent=1 // pred_check
      _
    $region3: #{lenet5_forward.1} parent=1 // pred_check_branch
      %20 = sbr.rel (0) target = $region5
    $region4: #{lenet5_forward.1} parent=1 // pred_region
      _
    $region5: #{lenet5_forward.1} parent=1 // pred_fallthru
      _
    // Predicated region
    $region6: #{lenet5_forward.1} parent=1 // pred_check
      _
    $region7: #{lenet5_forward.1} parent=1 // pred_check_branch
      %22 = sbr.rel (0) target = $region9
    $region8: #{lenet5_forward.1} parent=1 // pred_region
      _
    $region9: #{lenet5_forward.1} parent=1 // pred_fallthru
      _
    // Predicated region
    $region10: #{lenet5_forward.1} parent=1 // pred_check
      _
    $region11: #{lenet5_forward.1} parent=1 // pred_check_branch
      %24 = sbr.rel (0) target = $region13
    $region12: #{lenet5_forward.1} parent=1 // pred_region
      _
    $region13: #{lenet5_forward.1} parent=1 // pred_fallthru
      _
    // Predicated region
    $region14: #{lenet5_forward.1} parent=1 // pred_check
      _
    $region15: #{lenet5_forward.1} parent=1 // pred_check_branch
      %26 = sbr.rel (0) target = $region17
    $region16: #{lenet5_forward.1} parent=1 // pred_region
      _
    $region17: #{lenet5_forward.1} parent=1 // pred_fallthru
      _
    // Predicated region
    $region18: #{lenet5_forward.1} parent=1 // pred_check
      _
    $region19: #{lenet5_forward.1} parent=1 // pred_check_branch
      %28 = sbr.rel (0) target = $region21
    $region20: #{lenet5_forward.1} parent=1 // pred_region
      _
    $region21: #{lenet5_forward.1} parent=1 // pred_fallthru
      _
    // Predicated region
    $region22: #{lenet5_forward.1} parent=1 // pred_check
      _
    $region23: #{lenet5_forward.1} parent=1 // pred_check_branch
      %30 = sbr.rel (0) target = $region25
    $region24: #{lenet5_forward.1} parent=1 // pred_region
      _
    $region25: #{lenet5_forward.1} parent=1 // pred_fallthru
      _
    // Predicated region
    $region26: #{lenet5_forward.1} parent=1 // pred_check
      _
    $region27: #{lenet5_forward.1} parent=1 // pred_check_branch
      %32 = sbr.rel (0) target = $region29
    $region28: #{lenet5_forward.1} parent=1 // pred_region
      _
    $region29: #{lenet5_forward.1} parent=1 // pred_fallthru
      _
    // Predicated region
    $region30: #{lenet5_forward.1} parent=1 // pred_check
      _
    $region31: #{lenet5_forward.1} parent=1 // pred_check_branch
      %34 = sbr.rel (0) target = $region33
    $region32: #{lenet5_forward.1} parent=1 // pred_region
      _
    $region33: #{lenet5_forward.1} parent=1 // pred_fallthru
      _
    // Predicated region
    $region34: #{lenet5_forward.1} parent=1 // pred_check
      _
    $region35: #{lenet5_forward.1} parent=1 // pred_check_branch
      %36 = sbr.rel (0) target = $region37
    $region36: #{lenet5_forward.1} parent=1 // pred_region
      _
    $region37: #{lenet5_forward.1} parent=1 // pred_fallthru
      _
    // Predicated region
    $region38: #{lenet5_forward.1} parent=1 // pred_check
      _
    $region39: #{lenet5_forward.1} parent=1 // pred_check_branch
      %38 = sbr.rel (0) target = $region41
    $region40: #{lenet5_forward.1} parent=1 // pred_region
      _
    $region41: #{lenet5_forward.1} parent=1 // pred_fallthru
      _
    // Predicated region
    $region42: #{lenet5_forward.1} parent=1 // pred_check
      _
    $region43: #{lenet5_forward.1} parent=1 // pred_check_branch
      %40 = sbr.rel (0) target = $region45
    $region44: #{lenet5_forward.1} parent=1 // pred_region
      _
    $region45: #{lenet5_forward.1} parent=1 // pred_fallthru
      _
    // Predicated region
    $region46: #{lenet5_forward.1} parent=1 // pred_check
      _
    $region47: #{lenet5_forward.1} parent=1 // pred_check_branch
      %42 = sbr.rel (0) target = $region49
    $region48: #{lenet5_forward.1} parent=1 // pred_region
      _
    $region49: #{lenet5_forward.1} parent=1 // pred_fallthru
      _
    // Predicated region
    $region50: #{lenet5_forward.1} parent=1 // pred_check
      _
    $region51: #{lenet5_forward.1} parent=1 // pred_check_branch
      %44 = sbr.rel (0) target = $region53
    $region52: #{lenet5_forward.1} parent=1 // pred_region
      _
    $region53: #{lenet5_forward.1} parent=1 // pred_fallthru
      _
    %v45 = vld [vmem:[%s0] sm:$0xff]
    %v46 = vld [vmem:[%s0 + $0x8] sm:$0xff]
    %v47 = vld [vmem:[%s0 + $0x10] sm:$0xff]
    %v48 = vld [vmem:[%s0 + $0x18] sm:$0xff]
    %v49 = vld [vmem:[%s0 + $0x20] sm:$0xff]
    %v50 = vld [vmem:[%s0 + $0x28] sm:$0xff]
    %v51 = vld [vmem:[%s0 + $0x30] sm:$0xff]
    %v52 = vld [vmem:[%s0 + $0x38] sm:$0xff]
    %vm57 = vcmask 1046528
    %v58 = vrot.slane %v45, 1
    %v59 = vrot.slane %v46, 1
    %v60 = vsel %vm57, %v58, %v59
    %v61 = vrot.slane %v47, 1
    %v62 = vsel %vm57, %v59, %v61
    %v63 = vrot.slane %v48, 1
    %v64 = vsel %vm57, %v61, %v63
    %65 = vrot.lane.b32.xlu0 %v60, 32
    %v66 = vpop.permute.xlu0 %65
    %67 = vrot.lane.b32.xlu0 %v62, 32
    %v68 = vpop.permute.xlu0 %67
    %69 = vrot.lane.b32.xlu0 %v64, 32
    %v70 = vpop.permute.xlu0 %69
    %71 = vrot.lane.b32.xlu0 %v63, 32
    %v72 = vpop.permute.xlu0 %71
    %vm77 = vcmask 1045504
    %v78 = vrot.slane %v45, 2
    %v79 = vrot.slane %v46, 2
    %v80 = vsel %vm77, %v78, %v79
    %v81 = vrot.slane %v47, 2
    %v82 = vsel %vm77, %v79, %v81
    %v83 = vrot.slane %v48, 2
    %v84 = vsel %vm77, %v81, %v83
    %85 = vrot.lane.b32.xlu0 %v80, 64
    %v86 = vpop.permute.xlu0 %85
    %87 = vrot.lane.b32.xlu0 %v82, 64
    %v88 = vpop.permute.xlu0 %87
    %89 = vrot.lane.b32.xlu0 %v84, 64
    %v90 = vpop.permute.xlu0 %89
    %91 = vrot.lane.b32.xlu0 %v83, 64
    %v92 = vpop.permute.xlu0 %91
    %vm97 = vcmask 1044480
    %v98 = vrot.slane %v45, 3
    %v99 = vrot.slane %v46, 3
    %v100 = vsel %vm97, %v98, %v99
    %v101 = vrot.slane %v47, 3
    %v102 = vsel %vm97, %v99, %v101
    %v103 = vrot.slane %v48, 3
    %v104 = vsel %vm97, %v101, %v103
    %105 = vrot.lane.b32.xlu0 %v100, 96
    %v106 = vpop.permute.xlu0 %105
    %107 = vrot.lane.b32.xlu0 %v102, 96
    %v108 = vpop.permute.xlu0 %107
    %109 = vrot.lane.b32.xlu0 %v104, 96
    %v110 = vpop.permute.xlu0 %109
    %111 = vrot.lane.b32.xlu0 %v103, 96
    %v112 = vpop.permute.xlu0 %111
    %vm117 = vcmask 1043456
    %v118 = vrot.slane %v45, 4
    %v119 = vrot.slane %v46, 4
    %v120 = vsel %vm117, %v118, %v119
    %v121 = vrot.slane %v47, 4
    %v122 = vsel %vm117, %v119, %v121
    %v123 = vrot.slane %v48, 4
    %v124 = vsel %vm117, %v121, %v123
    %vm126 = vcmask 261120
    %v127 = vsel %vm126, %v45, %v66
    %v128 = vsel %vm126, %v46, %v68
    %v129 = vsel %vm126, %v47, %v70
    %v130 = vsel %vm126, %v48, %v72
    %vm131 = vcmask 523264
    %v132 = vsel %vm131, %v127, %v86
    %v133 = vsel %vm131, %v128, %v88
    %v134 = vsel %vm131, %v129, %v90
    %v135 = vsel %vm131, %v130, %v92
    %vm136 = vcmask 785408
    %v137 = vsel %vm136, %v132, %v106
    %v138 = vsel %vm136, %v133, %v108
    %v139 = vsel %vm136, %v134, %v110
    %v140 = vsel %vm136, %v135, %v112
    %v145 = vrot.slane %v49, 1
    %v146 = vrot.slane %v50, 1
    %v147 = vsel %vm57, %v145, %v146
    %v148 = vrot.slane %v51, 1
    %v149 = vsel %vm57, %v146, %v148
    %v150 = vrot.slane %v52, 1
    %v151 = vsel %vm57, %v148, %v150
    %152 = vrot.lane.b32.xlu0 %v147, 32
    %v153 = vpop.permute.xlu0 %152
    %154 = vrot.lane.b32.xlu0 %v149, 32
    %v155 = vpop.permute.xlu0 %154
    %156 = vrot.lane.b32.xlu0 %v151, 32
    %v157 = vpop.permute.xlu0 %156
    %158 = vrot.lane.b32.xlu0 %v150, 32
    %v159 = vpop.permute.xlu0 %158
    %v164 = vrot.slane %v49, 2
    %v165 = vrot.slane %v50, 2
    %v166 = vsel %vm77, %v164, %v165
    %v167 = vrot.slane %v51, 2
    %v168 = vsel %vm77, %v165, %v167
    %v169 = vrot.slane %v52, 2
    %v170 = vsel %vm77, %v167, %v169
    %171 = vrot.lane.b32.xlu0 %v166, 64
    %v172 = vpop.permute.xlu0 %171
    %173 = vrot.lane.b32.xlu0 %v168, 64
    %v174 = vpop.permute.xlu0 %173
    %175 = vrot.lane.b32.xlu0 %v170, 64
    %v176 = vpop.permute.xlu0 %175
    %177 = vrot.lane.b32.xlu0 %v169, 64
    %v178 = vpop.permute.xlu0 %177
    %v183 = vrot.slane %v49, 3
    %v184 = vrot.slane %v50, 3
    %v185 = vsel %vm97, %v183, %v184
    %v186 = vrot.slane %v51, 3
    %v187 = vsel %vm97, %v184, %v186
    %v188 = vrot.slane %v52, 3
    %v189 = vsel %vm97, %v186, %v188
    %190 = vrot.lane.b32.xlu0 %v185, 96
    %v191 = vpop.permute.xlu0 %190
    %192 = vrot.lane.b32.xlu0 %v187, 96
    %v193 = vpop.permute.xlu0 %192
    %194 = vrot.lane.b32.xlu0 %v189, 96
    %v195 = vpop.permute.xlu0 %194
    %196 = vrot.lane.b32.xlu0 %v188, 96
    %v197 = vpop.permute.xlu0 %196
    %v202 = vrot.slane %v49, 4
    %v203 = vrot.slane %v50, 4
    %v204 = vsel %vm117, %v202, %v203
    %v205 = vrot.slane %v51, 4
    %v206 = vsel %vm117, %v203, %v205
    %v207 = vrot.slane %v52, 4
    %v208 = vsel %vm117, %v205, %v207
    %v209 = vsel %vm126, %v49, %v153
    %v210 = vsel %vm126, %v50, %v155
    %v211 = vsel %vm126, %v51, %v157
    %v212 = vsel %vm126, %v52, %v159
    %v213 = vsel %vm131, %v209, %v172
    %v214 = vsel %vm131, %v210, %v174
    %v215 = vsel %vm131, %v211, %v176
    %v216 = vsel %vm131, %v212, %v178
    %v217 = vsel %vm136, %v213, %v191
    %v218 = vsel %vm136, %v214, %v193
    %v219 = vsel %vm136, %v215, %v195
    %v220 = vsel %vm136, %v216, %v197
    %v225 = vrot.slane %v217, 4
    %v226 = vrot.slane %v204, 4
    %v227 = vrot.slane %v218, 4
    %v228 = vsel %vm117, %v225, %v227
    %v229 = vrot.slane %v206, 4
    %v230 = vsel %vm117, %v226, %v229
    %v231 = vrot.slane %v219, 4
    %v232 = vsel %vm117, %v227, %v231
    %v233 = vrot.slane %v208, 4
    %v234 = vsel %vm117, %v229, %v233
    %v235 = vrot.slane %v220, 4
    %v236 = vsel %vm117, %v231, %v235
    %v237 = vrot.slane %v207, 4
    %v238 = vsel %vm117, %v233, %v237
    %v244 = vsel %vm117, %v140, %v225
    %v245 = vsel %vm117, %v123, %v226
    %v246 = vld [vmem:[%s3] sm:$0xff]
    %v247 = vld [vmem:[%s3 + $0x8] sm:$0xff]
    %v248 = vld [vmem:[%s3 + $0x10] sm:$0xff]
    %v249 = vld [vmem:[%s3 + $0x18] sm:$0xff]
    %v250 = vld [vmem:[%s3 + $0x20] sm:$0xff]
    %v251 = vld [vmem:[%s3 + $0x28] sm:$0xff]
    %v252 = vld [vmem:[%s3 + $0x30] sm:$0xff]
    %v253 = vld [vmem:[%s3 + $0x38] sm:$0xff]
    %v254 = vld [vmem:[%s3 + $0x40] sm:$0xff]
    %v255 = vld [vmem:[%s3 + $0x48] sm:$0xff]
    %v256 = vld [vmem:[%s3 + $0x50] sm:$0xff]
    %v257 = vld [vmem:[%s3 + $0x58] sm:$0xff]
    %v258 = vld [vmem:[%s3 + $0x60] sm:$0xff]
    %v259 = vld [vmem:[%s3 + $0x68] sm:$0xff]
    %v260 = vld [vmem:[%s3 + $0x70] sm:$0xff]
    %v261 = vld [vmem:[%s3 + $0x78] sm:$0xff]
    %v262 = vld [vmem:[%s3 + $0x80] sm:$0xff]
    %v263 = vld [vmem:[%s3 + $0x88] sm:$0xff]
    %v264 = vld [vmem:[%s3 + $0x90] sm:$0xff]
    %v265 = vld [vmem:[%s3 + $0x98] sm:$0xff]
    %v266 = vld [vmem:[%s3 + $0xa0] sm:$0xff]
    %v267 = vld [vmem:[%s3 + $0xa8] sm:$0xff]
    %v268 = vld [vmem:[%s3 + $0xb0] sm:$0xff]
    %v269 = vld [vmem:[%s3 + $0xb8] sm:$0xff]
    %v270 = vld [vmem:[%s3 + $0xc0] sm:$0xff]
    %v271 = vld [vmem:[%s3 + $0xc8] sm:$0xff]
    %v272 = vld [vmem:[%s3 + $0xd0] sm:$0xff]
    %v273 = vld [vmem:[%s3 + $0xd8] sm:$0xff]
    %v274 = vld [vmem:[%s3 + $0xe0] sm:$0xff]
    %v275 = vld [vmem:[%s3 + $0xe8] sm:$0xff]
    %v276 = vld [vmem:[%s3 + $0xf0] sm:$0xff]
    %v277 = vld [vmem:[%s3 + $0xf8] sm:$0xff]
    %v278 = vld [vmem:[%s3 + $0x100] sm:$0xff]
    %v279 = vld [vmem:[%s3 + $0x108] sm:$0xff]
    %v280 = vld [vmem:[%s3 + $0x110] sm:$0xff]
    %v281 = vld [vmem:[%s3 + $0x118] sm:$0xff]
    %v282 = vld [vmem:[%s3 + $0x120] sm:$0xff]
    %v283 = vld [vmem:[%s3 + $0x128] sm:$0xff]
    %v284 = vld [vmem:[%s3 + $0x130] sm:$0xff]
    %v285 = vld [vmem:[%s3 + $0x138] sm:$0xff]
    %v286 = vld [vmem:[%s4] sm:$0x3]
    %v288 = vlaneseq
    %v289 = vshrl.u32 %v288, 7
    %v290 = vsub.s32 0, %v289
    %v291 = vrot.slane %v286, %v290
    %v292 = vlaneseq
    %v293 = vshrl.u32 %v292, 7
    %v294 = vsub.s32 1, %v293
    %v295 = vrot.slane %v286, %v294
    %v298 = vsel %vm126, %v120, 0
    %v300 = vsel %vm126, %v122, 0
    %v302 = vsel %vm126, %v124, 0
    %v305 = vsel %vm126, %v245, 0
    %v307 = vsel %vm126, %v230, 0
    %v309 = vsel %vm126, %v234, 0
    %v311 = vsel %vm126, %v238, 0
    %313 = vmatprep.subr.mxu0 %v277
    %314 = vmatpush1.msra.mxu0 %v276
    %315 = vmatprep.subr.mxu0 %v275
    %316 = vmatpush1.msra.mxu0 %v274
    %317 = vmatprep.subr.mxu0 %v273
    %318 = vmatpush1.msra.mxu0 %v272
    %319 = vmatprep.subr.mxu0 %v271
    %320 = vmatpush1.msra.mxu0 %v270
    %321 = vmatprep.subr.mxu0 %v269
    %322 = vmatpush1.msra.mxu0 %v268
    %323 = vmatprep.subr.mxu0 %v267
    %324 = vmatpush1.msra.mxu0 %v266
    %325 = vmatprep.subr.mxu0 %v265
    %326 = vmatpush1.msra.mxu0 %v264
    %327 = vmatprep.subr.mxu0 %v263
    %328 = vmatpush1.msra.mxu0 %v262
    %329 = vmatprep.subr.mxu0 %v261
    %330 = vmatpush1.msra.mxu0 %v260
    %331 = vmatprep.subr.mxu0 %v259
    %332 = vmatpush1.msra.mxu0 %v258
    %333 = vmatprep.subr.mxu0 %v257
    %334 = vmatpush1.msra.mxu0 %v256
    %335 = vmatprep.subr.mxu0 %v255
    %336 = vmatpush1.msra.mxu0 %v254
    %337 = vmatprep.subr.mxu0 %v253
    %338 = vmatpush1.msra.mxu0 %v252
    %339 = vmatprep.subr.mxu0 %v251
    %340 = vmatpush1.msra.mxu0 %v250
    %341 = vmatprep.subr.mxu0 %v249
    %342 = vmatpush1.msra.mxu0 %v248
    %343 = vmatprep.subr.mxu0 %v247
    %344 = vmatpush1.msra.mxu0 %v246
    %345 = vmatprep.subr.mxu0 0.0
    %346 = vmatpush2.msra.mxu0 0.0
    %347 = vmatprep.subr.mxu0 0.0
    %348 = vmatpush2.msra.mxu0 0.0
    %349 = vmatprep.subr.mxu0 0.0
    %350 = vmatpush2.msra.mxu0 0.0
    %351 = vmatprep.subr.mxu0 0.0
    %352 = vmatpush2.msra.mxu0 0.0
    %353 = vmatprep.subr.mxu0 0.0
    %354 = vmatpush2.msra.mxu0 0.0
    %355 = vmatprep.subr.mxu0 0.0
    %356 = vmatpush2.msra.mxu0 0.0
    %357 = vmatprep.subr.mxu0 0.0
    %358 = vmatpush2.msra.mxu0 0.0
    %359 = vmatprep.subr.mxu0 0.0
    %360 = vmatpush2.msra.mxu0 0.0
    %361 = vmatprep.subr.mxu0 0.0
    %362 = vmatpush2.msra.mxu0 0.0
    %363 = vmatprep.subr.mxu0 0.0
    %364 = vmatpush2.msra.mxu0 0.0
    %365 = vmatprep.subr.mxu0 0.0
    %366 = vmatpush2.msra.mxu0 0.0
    %367 = vmatprep.subr.mxu0 0.0
    %368 = vmatpush2.msra.mxu0 0.0
    %369 = vmatprep.subr.mxu0 %v285
    %370 = vmatpush2.msra.mxu0 %v284
    %371 = vmatprep.subr.mxu0 %v283
    %372 = vmatpush2.msra.mxu0 %v282
    %373 = vmatprep.subr.mxu0 %v281
    %374 = vmatpush2.msra.mxu0 %v280
    %375 = vmatprep.subr.mxu0 %v279
    %376 = vmatpush2.msra.mxu0 %v278
    %377 = vmatprep.mubr.f32.mxu0 %v298
    %378 = vmatmul.mubr.f32.gmra.mxu0 %v137
    %v379 = vpop.f32.mrf.mxu0
    %v380 = vadd.f32 %v291, %v379
    %v381 = vpop.f32.mrf.mxu0
    %v382 = vadd.f32 %v295, %v381
    %383 = vmatprep.mubr.f32.mxu0 %v300
    %384 = vmatmul.mubr.f32.gmra.mxu0 %v138
    %v385 = vpop.f32.mrf.mxu0
    %v386 = vadd.f32 %v291, %v385
    %v387 = vpop.f32.mrf.mxu0
    %v388 = vadd.f32 %v295, %v387
    %389 = vmatprep.mubr.f32.mxu0 %v302
    %390 = vmatmul.mubr.f32.gmra.mxu0 %v139
    %v391 = vpop.f32.mrf.mxu0
    %v392 = vadd.f32 %v291, %v391
    %v393 = vpop.f32.mrf.mxu0
    %v394 = vadd.f32 %v295, %v393
    %395 = vmatprep.mubr.f32.mxu0 %v305
    %396 = vmatmul.mubr.f32.gmra.mxu0 %v244
    %v397 = vpop.f32.mrf.mxu0
    %v398 = vadd.f32 %v291, %v397
    %v399 = vpop.f32.mrf.mxu0
    %v400 = vadd.f32 %v295, %v399
    %401 = vmatprep.mubr.f32.mxu0 %v307
    %402 = vmatmul.mubr.f32.gmra.mxu0 %v228
    %v403 = vpop.f32.mrf.mxu0
    %v404 = vadd.f32 %v291, %v403
    %v405 = vpop.f32.mrf.mxu0
    %v406 = vadd.f32 %v295, %v405
    %407 = vmatprep.mubr.f32.mxu0 %v309
    %408 = vmatmul.mubr.f32.gmra.mxu0 %v232
    %v409 = vpop.f32.mrf.mxu0
    %v410 = vadd.f32 %v291, %v409
    %v411 = vpop.f32.mrf.mxu0
    %v412 = vadd.f32 %v295, %v411
    %413 = vmatprep.mubr.f32.mxu0 %v311
    %414 = vmatmul.mubr.f32.gmra.mxu0 %v236
    %v415 = vpop.f32.mrf.mxu0
    %v416 = vadd.f32 %v291, %v415
    %v417 = vpop.f32.mrf.mxu0
    %v418 = vadd.f32 %v295, %v417
    %419 = vdwg.mxu0
    %v420 = vmul.f32 %v380, 0.5
    %v421 = vmul.f32 %v382, 0.5
    %v422 = vmul.f32 %v386, 0.5
    %v423 = vmul.f32 %v388, 0.5
    %v424 = vmul.f32 %v392, 0.5
    %v425 = vmul.f32 %v394, 0.5
    %v426 = vmul.f32 %v398, 0.5
    %v427 = vmul.f32 %v400, 0.5
    %v428 = vmul.f32 %v404, 0.5
    %v429 = vmul.f32 %v406, 0.5
    %v430 = vmul.f32 %v410, 0.5
    %v431 = vmul.f32 %v412, 0.5
    %v432 = vmul.f32 %v416, 0.5
    %v433 = vmul.f32 %v418, 0.5
    %v434 = vtanh.pop %v420
    %v435 = vtanh.pop %v421
    %v436 = vtanh.pop %v422
    %v437 = vtanh.pop %v423
    %v438 = vtanh.pop %v424
    %v439 = vtanh.pop %v425
    %v440 = vtanh.pop %v426
    %v441 = vtanh.pop %v427
    %v442 = vtanh.pop %v428
    %v443 = vtanh.pop %v429
    %v444 = vtanh.pop %v430
    %v445 = vtanh.pop %v431
    %v446 = vtanh.pop %v432
    %v447 = vtanh.pop %v433
    %v448 = vmul.f32 %v434, 0.5
    %v449 = vmul.f32 %v435, 0.5
    %v450 = vmul.f32 %v436, 0.5
    %v451 = vmul.f32 %v437, 0.5
    %v452 = vmul.f32 %v438, 0.5
    %v453 = vmul.f32 %v439, 0.5
    %v454 = vmul.f32 %v440, 0.5
    %v455 = vmul.f32 %v441, 0.5
    %v456 = vmul.f32 %v442, 0.5
    %v457 = vmul.f32 %v443, 0.5
    %v458 = vmul.f32 %v444, 0.5
    %v459 = vmul.f32 %v445, 0.5
    %v460 = vmul.f32 %v446, 0.5
    %v461 = vmul.f32 %v447, 0.5
    %v462 = vadd.f32 %v448, 0.5
    %v463 = vadd.f32 %v449, 0.5
    %v464 = vadd.f32 %v450, 0.5
    %v465 = vadd.f32 %v451, 0.5
    %v466 = vadd.f32 %v452, 0.5
    %v467 = vadd.f32 %v453, 0.5
    %v468 = vadd.f32 %v454, 0.5
    %v469 = vadd.f32 %v455, 0.5
    %v470 = vadd.f32 %v456, 0.5
    %v471 = vadd.f32 %v457, 0.5
    %v472 = vadd.f32 %v458, 0.5
    %v473 = vadd.f32 %v459, 0.5
    %v474 = vadd.f32 %v460, 0.5
    %v475 = vadd.f32 %v461, 0.5
    %v476 = vld [vmem:[%s1] sm:$0xff]
    %v477 = vld [vmem:[%s1 + $0x8] sm:$0xff]
    %v478 = vld [vmem:[%s1 + $0x10] sm:$0xff]
    %v479 = vld [vmem:[%s1 + $0x18] sm:$0xf]
    %vm480 = vcmask 457728
    %v482 = vsel %vm480, %v476, 0
    %v485 = vsel %vm480, %v477, 0
    %v488 = vsel %vm480, %v478, 0
    %v491 = vsel %vm480, %v479, 0
    %493 = vmatprep.subr.mxu0 0.0
    %494 = vmatpush1.msra.mxu0 0.0
    %495 = vmatprep.subr.mxu0 0.0
    %496 = vmatpush1.msra.mxu0 0.0
    %497 = vmatprep.subr.mxu0 0.0
    %498 = vmatpush1.msra.mxu0 0.0
    %499 = vmatprep.subr.mxu0 0.0
    %500 = vmatpush1.msra.mxu0 0.0
    %501 = vmatprep.subr.mxu0 0.0
    %502 = vmatpush1.msra.mxu0 0.0
    %503 = vmatprep.subr.mxu0 0.0
    %504 = vmatpush1.msra.mxu0 0.0
    %505 = vmatprep.subr.mxu0 0.0
    %506 = vmatpush1.msra.mxu0 0.0
    %507 = vmatprep.subr.mxu0 0.0
    %508 = vmatpush1.msra.mxu0 0.0
    %509 = vmatprep.subr.mxu0 0.0
    %510 = vmatpush1.msra.mxu0 0.0
    %511 = vmatprep.subr.mxu0 %v475
    %512 = vmatpush1.msra.mxu0 %v474
    %513 = vmatprep.subr.mxu0 %v473
    %514 = vmatpush1.msra.mxu0 %v472
    %515 = vmatprep.subr.mxu0 %v471
    %516 = vmatpush1.msra.mxu0 %v470
    %517 = vmatprep.subr.mxu0 %v469
    %518 = vmatpush1.msra.mxu0 %v468
    %519 = vmatprep.subr.mxu0 %v467
    %520 = vmatpush1.msra.mxu0 %v466
    %521 = vmatprep.subr.mxu0 %v465
    %522 = vmatpush1.msra.mxu0 %v464
    %523 = vmatprep.subr.mxu0 %v463
    %524 = vmatpush1.msra.mxu0 %v462
    %525 = vmatprep.subr.mxu0 0.0
    %526 = vmatpush2.msra.mxu0 0.0
    %527 = vmatprep.subr.mxu0 0.0
    %528 = vmatpush2.msra.mxu0 0.0
    %529 = vmatprep.subr.mxu0 0.0
    %530 = vmatpush2.msra.mxu0 0.0
    %531 = vmatprep.subr.mxu0 0.0
    %532 = vmatpush2.msra.mxu0 0.0
    %533 = vmatprep.subr.mxu0 0.0
    %534 = vmatpush2.msra.mxu0 0.0
    %535 = vmatprep.subr.mxu0 0.0
    %536 = vmatpush2.msra.mxu0 0.0
    %537 = vmatprep.subr.mxu0 0.0
    %538 = vmatpush2.msra.mxu0 0.0
    %539 = vmatprep.subr.mxu0 0.0
    %540 = vmatpush2.msra.mxu0 0.0
    %541 = vmatprep.subr.mxu0 0.0
    %542 = vmatpush2.msra.mxu0 0.0
    %543 = vmatprep.subr.mxu0 0.0
    %544 = vmatpush2.msra.mxu0 0.0
    %545 = vmatprep.subr.mxu0 0.0
    %546 = vmatpush2.msra.mxu0 0.0
    %547 = vmatprep.subr.mxu0 0.0
    %548 = vmatpush2.msra.mxu0 0.0
    %549 = vmatprep.subr.mxu0 0.0
    %550 = vmatpush2.msra.mxu0 0.0
    %551 = vmatprep.subr.mxu0 0.0
    %552 = vmatpush2.msra.mxu0 0.0
    %553 = vmatprep.subr.mxu0 0.0
    %554 = vmatpush2.msra.mxu0 0.0
    %555 = vmatprep.subr.mxu0 0.0
    %556 = vmatpush2.msra.mxu0 0.0
    %557 = vmatprep.mubr.f32.mxu0 0.0
    %558 = vmatmul.mubr.f32.gmra.mxu0 %v482
    %v559 = vpop.f32.mrf.mxu0
    %v560 = vadd.f32 0.0, %v559
    %v561 = vpop.f32.mrf.mxu0
    %v562 = vadd.f32 0.0, %v561
    %563 = vmatprep.mubr.f32.mxu0 0.0
    %564 = vmatmul.mubr.f32.gmra.mxu0 %v485
    %v565 = vpop.f32.mrf.mxu0
    %v566 = vadd.f32 0.0, %v565
    %v567 = vpop.f32.mrf.mxu0
    %v568 = vadd.f32 0.0, %v567
    %569 = vmatprep.mubr.f32.mxu0 0.0
    %570 = vmatmul.mubr.f32.gmra.mxu0 %v488
    %v571 = vpop.f32.mrf.mxu0
    %v572 = vadd.f32 0.0, %v571
    %v573 = vpop.f32.mrf.mxu0
    %v574 = vadd.f32 0.0, %v573
    %575 = vmatprep.mubr.f32.mxu0 0.0
    %576 = vmatmul.mubr.f32.gmra.mxu0 %v491
    %v577 = vpop.f32.mrf.mxu0
    %v578 = vadd.f32 0.0, %v577
    %v579 = vpop.f32.mrf.mxu0
    %v580 = vadd.f32 0.0, %v579
    %581 = vdwg.mxu0
    %v586 = vrot.slane %v560, 1
    %v587 = vrot.slane %v566, 1
    %v588 = vsel %vm57, %v586, %v587
    %v589 = vrot.slane %v562, 1
    %v590 = vrot.slane %v568, 1
    %v591 = vsel %vm57, %v589, %v590
    %592 = vrot.lane.b32.xlu0 %v588, 40
    %v593 = vpop.permute.xlu0 %592
    %594 = vrot.lane.b32.xlu0 %v591, 40
    %v595 = vpop.permute.xlu0 %594
    %596 = vrot.lane.b32.xlu0 %v587, 40
    %v597 = vpop.permute.xlu0 %596
    %598 = vrot.lane.b32.xlu0 %v590, 40
    %v599 = vpop.permute.xlu0 %598
    %vm600 = vcmask 326656
    %v601 = vsel %vm600, %v593, %v595
    %v602 = vsel %vm600, %v597, %v599
    %v607 = vrot.slane %v560, 2
    %v608 = vrot.slane %v566, 2
    %v609 = vsel %vm77, %v607, %v608
    %v610 = vrot.slane %v562, 2
    %v611 = vrot.slane %v568, 2
    %v612 = vsel %vm77, %v610, %v611
    %613 = vrot.lane.b32.xlu0 %v609, 80
    %v614 = vpop.permute.xlu0 %613
    %615 = vrot.lane.b32.xlu0 %v612, 80
    %v616 = vpop.permute.xlu0 %615
    %617 = vrot.lane.b32.xlu0 %v608, 80
    %v618 = vpop.permute.xlu0 %617
    %619 = vrot.lane.b32.xlu0 %v611, 80
    %v620 = vpop.permute.xlu0 %619
    %vm621 = vcmask 654336
    %v622 = vsel %vm621, %v614, %v616
    %v623 = vsel %vm621, %v618, %v620
    %v628 = vrot.slane %v560, 3
    %v629 = vrot.slane %v566, 3
    %v630 = vsel %vm97, %v628, %v629
    %v631 = vrot.slane %v562, 3
    %v632 = vrot.slane %v568, 3
    %v633 = vsel %vm97, %v631, %v632
    %634 = vrot.lane.b32.xlu0 %v630, 120
    %v635 = vpop.permute.xlu0 %634
    %636 = vrot.lane.b32.xlu0 %v633, 120
    %v637 = vpop.permute.xlu0 %636
    %638 = vrot.lane.b32.xlu0 %v629, 120
    %v639 = vpop.permute.xlu0 %638
    %640 = vrot.lane.b32.xlu0 %v632, 120
    %v641 = vpop.permute.xlu0 %640
    %vm642 = vcmask 982016
    %v643 = vsel %vm642, %v635, %v637
    %v644 = vsel %vm642, %v639, %v641
    %v651 = vrot.slane %v560, 4
    %v652 = vrot.slane %v566, 4
    %v653 = vsel %vm117, %v651, %v652
    %v654 = vrot.slane %v562, 4
    %v655 = vrot.slane %v568, 4
    %v656 = vsel %vm117, %v654, %v655
    %657 = vrot.lane.b32.xlu0 %v653, 32
    %v658 = vpop.permute.xlu0 %657
    %659 = vrot.lane.b32.xlu0 %v656, 32
    %v660 = vpop.permute.xlu0 %659
    %661 = vrot.lane.b32.xlu0 %v652, 32
    %v662 = vpop.permute.xlu0 %661
    %663 = vrot.lane.b32.xlu0 %v655, 32
    %v664 = vpop.permute.xlu0 %663
    %v665 = vsel %vm126, %v658, %v660
    %v666 = vsel %vm126, %v662, %v664
    %v670 = vsel %vm600, %v562, %v593
    %v671 = vsel %vm600, %v568, %v597
    %v672 = vsel %vm621, %v601, %v614
    %v673 = vsel %vm621, %v602, %v618
    %v674 = vsel %vm642, %v622, %v635
    %v675 = vsel %vm642, %v623, %v639
    %v676 = vsel %vm126, %v637, %v658
    %v677 = vsel %vm126, %v641, %v662
    %v682 = vrot.slane %v572, 1
    %v683 = vsel %vm57, %v587, %v682
    %v684 = vrot.slane %v574, 1
    %v685 = vsel %vm57, %v590, %v684
    %v686 = vrot.slane %v578, 1
    %v687 = vsel %vm57, %v682, %v686
    %v688 = vrot.slane %v580, 1
    %v689 = vsel %vm57, %v684, %v688
    %690 = vrot.lane.b32.xlu0 %v683, 40
    %v691 = vpop.permute.xlu0 %690
    %692 = vrot.lane.b32.xlu0 %v685, 40
    %v693 = vpop.permute.xlu0 %692
    %694 = vrot.lane.b32.xlu0 %v687, 40
    %v695 = vpop.permute.xlu0 %694
    %696 = vrot.lane.b32.xlu0 %v689, 40
    %v697 = vpop.permute.xlu0 %696
    %v698 = vsel %vm600, %v691, %v693
    %v699 = vsel %vm600, %v695, %v697
    %v704 = vrot.slane %v572, 2
    %v705 = vrot.slane %v574, 2
    %v706 = vrot.slane %v578, 2
    %v707 = vsel %vm77, %v704, %v706
    %v708 = vrot.slane %v580, 2
    %v709 = vsel %vm77, %v705, %v708
    %710 = vrot.lane.b32.xlu0 %v704, 80
    %v711 = vpop.permute.xlu0 %710
    %712 = vrot.lane.b32.xlu0 %v705, 80
    %v713 = vpop.permute.xlu0 %712
    %714 = vrot.lane.b32.xlu0 %v707, 80
    %v715 = vpop.permute.xlu0 %714
    %716 = vrot.lane.b32.xlu0 %v709, 80
    %v717 = vpop.permute.xlu0 %716
    %v718 = vsel %vm621, %v711, %v713
    %v719 = vsel %vm621, %v715, %v717
    %v724 = vrot.slane %v572, 3
    %v725 = vrot.slane %v574, 3
    %v726 = vrot.slane %v578, 3
    %v727 = vsel %vm97, %v724, %v726
    %v728 = vrot.slane %v580, 3
    %v729 = vsel %vm97, %v725, %v728
    %730 = vrot.lane.b32.xlu0 %v724, 120
    %v731 = vpop.permute.xlu0 %730
    %732 = vrot.lane.b32.xlu0 %v725, 120
    %v733 = vpop.permute.xlu0 %732
    %734 = vrot.lane.b32.xlu0 %v727, 120
    %v735 = vpop.permute.xlu0 %734
    %736 = vrot.lane.b32.xlu0 %v729, 120
    %v737 = vpop.permute.xlu0 %736
    %v738 = vsel %vm642, %v731, %v733
    %v739 = vsel %vm642, %v735, %v737
    %v744 = vrot.slane %v572, 4
    %v745 = vrot.slane %v574, 4
    %v746 = vrot.slane %v578, 4
    %v747 = vsel %vm117, %v744, %v746
    %v748 = vrot.slane %v580, 4
    %v749 = vsel %vm117, %v745, %v748
    %750 = vrot.lane.b32.xlu0 %v744, 32
    %v751 = vpop.permute.xlu0 %750
    %752 = vrot.lane.b32.xlu0 %v745, 32
    %v753 = vpop.permute.xlu0 %752
    %754 = vrot.lane.b32.xlu0 %v747, 32
    %v755 = vpop.permute.xlu0 %754
    %756 = vrot.lane.b32.xlu0 %v749, 32
    %v757 = vpop.permute.xlu0 %756
    %v758 = vsel %vm126, %v751, %v753
    %v759 = vsel %vm126, %v755, %v757
    %v762 = vsel %vm600, %v568, %v691
    %v763 = vsel %vm600, %v574, %v695
    %v764 = vsel %vm621, %v698, %v711
    %v765 = vsel %vm621, %v699, %v715
    %v766 = vsel %vm642, %v718, %v731
    %v767 = vsel %vm642, %v719, %v735
    %v768 = vsel %vm126, %v733, %v751
    %v769 = vsel %vm126, %v737, %v755
    %v778 = vsel %vm117, %v652, %v744
    %v779 = vrot.slane %v762, 4
    %v780 = vrot.slane %v763, 4
    %v781 = vsel %vm117, %v779, %v780
    %v782 = vrot.slane %v764, 4
    %v783 = vrot.slane %v765, 4
    %v784 = vsel %vm117, %v782, %v783
    %v785 = vrot.slane %v766, 4
    %v786 = vrot.slane %v767, 4
    %v787 = vsel %vm117, %v785, %v786
    %v788 = vrot.slane %v738, 4
    %v789 = vrot.slane %v739, 4
    %v790 = vsel %vm117, %v788, %v789
    %v791 = vrot.slane %v768, 4
    %v792 = vrot.slane %v769, 4
    %v793 = vsel %vm117, %v791, %v792
    %v794 = vrot.slane %v758, 4
    %v795 = vrot.slane %v759, 4
    %v796 = vsel %vm117, %v794, %v795
    %vm810 = vcmask 1041408
    %v811 = vsel %vm810, %v566, %v778
    %v812 = vsel %vm810, %v671, %v781
    %v813 = vsel %vm810, %v673, %v784
    %v814 = vsel %vm810, %v675, %v787
    %v815 = vsel %vm810, %v644, %v790
    %v816 = vsel %vm810, %v677, %v793
    %v817 = vsel %vm810, %v666, %v796
    %v818 = vld [vmem:[%s5] sm:$0xff]
    %v819 = vld [vmem:[%s5 + $0x8] sm:$0xff]
    %v820 = vld [vmem:[%s5 + $0x10] sm:$0xff]
    %v821 = vld [vmem:[%s5 + $0x18] sm:$0xff]
    %v822 = vld [vmem:[%s5 + $0x20] sm:$0xff]
    %v823 = vld [vmem:[%s5 + $0x28] sm:$0xff]
    %v824 = vld [vmem:[%s5 + $0x30] sm:$0xff]
    %v825 = vld [vmem:[%s5 + $0x38] sm:$0xff]
    %v826 = vld [vmem:[%s5 + $0x40] sm:$0xff]
    %v827 = vld [vmem:[%s5 + $0x48] sm:$0xff]
    %v828 = vld [vmem:[%s5 + $0x50] sm:$0xff]
    %v829 = vld [vmem:[%s5 + $0x58] sm:$0xff]
    %v830 = vld [vmem:[%s5 + $0x60] sm:$0xff]
    %v831 = vld [vmem:[%s5 + $0x68] sm:$0xff]
    %v832 = vld [vmem:[%s5 + $0x70] sm:$0xff]
    %v833 = vld [vmem:[%s5 + $0x78] sm:$0xff]
    %v834 = vld [vmem:[%s5 + $0x80] sm:$0xff]
    %v835 = vld [vmem:[%s5 + $0x88] sm:$0xff]
    %v836 = vld [vmem:[%s5 + $0x90] sm:$0xff]
    %v837 = vld [vmem:[%s5 + $0x98] sm:$0xff]
    %v838 = vld [vmem:[%s5 + $0xa0] sm:$0xff]
    %v839 = vld [vmem:[%s5 + $0xa8] sm:$0xff]
    %v840 = vld [vmem:[%s5 + $0xb0] sm:$0xff]
    %v841 = vld [vmem:[%s5 + $0xb8] sm:$0xff]
    %v842 = vld [vmem:[%s5 + $0xc0] sm:$0xff]
    %v843 = vld [vmem:[%s5 + $0xc8] sm:$0xff]
    %v844 = vld [vmem:[%s5 + $0xd0] sm:$0xff]
    %v845 = vld [vmem:[%s5 + $0xd8] sm:$0xff]
    %v846 = vld [vmem:[%s5 + $0xe0] sm:$0xff]
    %v847 = vld [vmem:[%s5 + $0xe8] sm:$0xff]
    %v848 = vld [vmem:[%s5 + $0xf0] sm:$0xff]
    %v849 = vld [vmem:[%s5 + $0xf8] sm:$0xff]
    %v850 = vld [vmem:[%s5 + $0x100] sm:$0xff]
    %v851 = vld [vmem:[%s5 + $0x108] sm:$0xff]
    %v852 = vld [vmem:[%s5 + $0x110] sm:$0xff]
    %v853 = vld [vmem:[%s5 + $0x118] sm:$0xff]
    %v854 = vld [vmem:[%s5 + $0x120] sm:$0xff]
    %v855 = vld [vmem:[%s5 + $0x128] sm:$0xff]
    %v856 = vld [vmem:[%s5 + $0x130] sm:$0xff]
    %v857 = vld [vmem:[%s5 + $0x138] sm:$0xff]
    %v858 = vld [vmem:[%s5 + $0x140] sm:$0xff]
    %v859 = vld [vmem:[%s5 + $0x148] sm:$0xff]
    %v860 = vld [vmem:[%s5 + $0x150] sm:$0xff]
    %v861 = vld [vmem:[%s5 + $0x158] sm:$0xff]
    %v862 = vld [vmem:[%s5 + $0x160] sm:$0xff]
    %v863 = vld [vmem:[%s5 + $0x168] sm:$0xff]
    %v864 = vld [vmem:[%s5 + $0x170] sm:$0xff]
    %v865 = vld [vmem:[%s5 + $0x178] sm:$0xff]
    %v866 = vld [vmem:[%s5 + $0x180] sm:$0xff]
    %v867 = vld [vmem:[%s5 + $0x188] sm:$0xff]
    %v868 = vld [vmem:[%s5 + $0x190] sm:$0xff]
    %v869 = vld [vmem:[%s5 + $0x198] sm:$0xff]
    %v870 = vld [vmem:[%s5 + $0x1a0] sm:$0xff]
    %v871 = vld [vmem:[%s5 + $0x1a8] sm:$0xff]
    %v872 = vld [vmem:[%s5 + $0x1b0] sm:$0xff]
    %v873 = vld [vmem:[%s5 + $0x1b8] sm:$0xff]
    %v874 = vld [vmem:[%s5 + $0x1c0] sm:$0xff]
    %v875 = vld [vmem:[%s5 + $0x1c8] sm:$0xff]
    %v876 = vld [vmem:[%s5 + $0x1d0] sm:$0xff]
    %v877 = vld [vmem:[%s5 + $0x1d8] sm:$0xff]
    %v878 = vld [vmem:[%s5 + $0x1e0] sm:$0xff]
    %v879 = vld [vmem:[%s5 + $0x1e8] sm:$0xff]
    %v880 = vld [vmem:[%s5 + $0x1f0] sm:$0xff]
    %v881 = vld [vmem:[%s5 + $0x1f8] sm:$0xff]
    %v882 = vld [vmem:[%s5 + $0x200] sm:$0xff]
    %v883 = vld [vmem:[%s5 + $0x208] sm:$0xff]
    %v884 = vld [vmem:[%s5 + $0x210] sm:$0xff]
    %v885 = vld [vmem:[%s5 + $0x218] sm:$0xff]
    %v886 = vld [vmem:[%s5 + $0x220] sm:$0xff]
    %v887 = vld [vmem:[%s5 + $0x228] sm:$0xff]
    %v888 = vld [vmem:[%s5 + $0x230] sm:$0xff]
    %v889 = vld [vmem:[%s5 + $0x238] sm:$0xff]
    %v890 = vld [vmem:[%s5 + $0x240] sm:$0xff]
    %v891 = vld [vmem:[%s5 + $0x248] sm:$0xff]
    %v892 = vld [vmem:[%s5 + $0x250] sm:$0xff]
    %v893 = vld [vmem:[%s5 + $0x258] sm:$0xff]
    %v894 = vld [vmem:[%s5 + $0x260] sm:$0xff]
    %v895 = vld [vmem:[%s5 + $0x268] sm:$0xff]
    %v896 = vld [vmem:[%s5 + $0x270] sm:$0xff]
    %v897 = vld [vmem:[%s5 + $0x278] sm:$0xff]
    %v898 = vld [vmem:[%s5 + $0x280] sm:$0xff]
    %v899 = vld [vmem:[%s5 + $0x288] sm:$0xff]
    %v900 = vld [vmem:[%s5 + $0x290] sm:$0xff]
    %v901 = vld [vmem:[%s5 + $0x298] sm:$0xff]
    %v902 = vld [vmem:[%s5 + $0x2a0] sm:$0xff]
    %v903 = vld [vmem:[%s5 + $0x2a8] sm:$0xff]
    %v904 = vld [vmem:[%s5 + $0x2b0] sm:$0xff]
    %v905 = vld [vmem:[%s5 + $0x2b8] sm:$0xff]
    %v906 = vld [vmem:[%s5 + $0x2c0] sm:$0xff]
    %v907 = vld [vmem:[%s5 + $0x2c8] sm:$0xff]
    %v908 = vld [vmem:[%s5 + $0x2d0] sm:$0xff]
    %v909 = vld [vmem:[%s5 + $0x2d8] sm:$0xff]
    %v910 = vld [vmem:[%s5 + $0x2e0] sm:$0xff]
    %v911 = vld [vmem:[%s5 + $0x2e8] sm:$0xff]
    %v912 = vld [vmem:[%s5 + $0x2f0] sm:$0xff]
    %v913 = vld [vmem:[%s5 + $0x2f8] sm:$0xff]
    %v914 = vld [vmem:[%s5 + $0x300] sm:$0xff]
    %v915 = vld [vmem:[%s5 + $0x308] sm:$0xff]
    %v916 = vld [vmem:[%s5 + $0x310] sm:$0xff]
    %v917 = vld [vmem:[%s5 + $0x318] sm:$0xff]
    %v918 = vld [vmem:[%s5 + $0x320] sm:$0xff]
    %v919 = vld [vmem:[%s5 + $0x328] sm:$0xff]
    %v920 = vld [vmem:[%s5 + $0x330] sm:$0xff]
    %v921 = vld [vmem:[%s5 + $0x338] sm:$0xff]
    %v922 = vld [vmem:[%s5 + $0x340] sm:$0xff]
    %v923 = vld [vmem:[%s5 + $0x348] sm:$0xff]
    %v924 = vld [vmem:[%s5 + $0x350] sm:$0xff]
    %v925 = vld [vmem:[%s5 + $0x358] sm:$0xff]
    %v926 = vld [vmem:[%s5 + $0x360] sm:$0xff]
    %v927 = vld [vmem:[%s5 + $0x368] sm:$0xff]
    %v928 = vld [vmem:[%s5 + $0x370] sm:$0xff]
    %v929 = vld [vmem:[%s5 + $0x378] sm:$0xff]
    %v930 = vld [vmem:[%s5 + $0x380] sm:$0xff]
    %v931 = vld [vmem:[%s5 + $0x388] sm:$0xff]
    %v932 = vld [vmem:[%s5 + $0x390] sm:$0xff]
    %v933 = vld [vmem:[%s5 + $0x398] sm:$0xff]
    %v934 = vld [vmem:[%s5 + $0x3a0] sm:$0xff]
    %v935 = vld [vmem:[%s5 + $0x3a8] sm:$0xff]
    %v936 = vld [vmem:[%s5 + $0x3b0] sm:$0xff]
    %v937 = vld [vmem:[%s5 + $0x3b8] sm:$0xff]
    %v938 = vld [vmem:[%s5 + $0x3c0] sm:$0xff]
    %v939 = vld [vmem:[%s5 + $0x3c8] sm:$0xff]
    %v940 = vld [vmem:[%s5 + $0x3d0] sm:$0xff]
    %v941 = vld [vmem:[%s5 + $0x3d8] sm:$0xff]
    %v942 = vld [vmem:[%s5 + $0x3e0] sm:$0xff]
    %v943 = vld [vmem:[%s5 + $0x3e8] sm:$0xff]
    %v944 = vld [vmem:[%s5 + $0x3f0] sm:$0xff]
    %v945 = vld [vmem:[%s5 + $0x3f8] sm:$0xff]
    %v946 = vld [vmem:[%s5 + $0x400] sm:$0xff]
    %v947 = vld [vmem:[%s5 + $0x408] sm:$0xff]
    %v948 = vld [vmem:[%s5 + $0x410] sm:$0xff]
    %v949 = vld [vmem:[%s5 + $0x418] sm:$0xff]
    %v950 = vld [vmem:[%s5 + $0x420] sm:$0xff]
    %v951 = vld [vmem:[%s5 + $0x428] sm:$0xff]
    %v952 = vld [vmem:[%s5 + $0x430] sm:$0xff]
    %v953 = vld [vmem:[%s5 + $0x438] sm:$0xff]
    %v954 = vld [vmem:[%s5 + $0x440] sm:$0xff]
    %v955 = vld [vmem:[%s5 + $0x448] sm:$0xff]
    %v956 = vld [vmem:[%s5 + $0x450] sm:$0xff]
    %v957 = vld [vmem:[%s5 + $0x458] sm:$0xff]
    %v958 = vld [vmem:[%s5 + $0x460] sm:$0xff]
    %v959 = vld [vmem:[%s5 + $0x468] sm:$0xff]
    %v960 = vld [vmem:[%s5 + $0x470] sm:$0xff]
    %v961 = vld [vmem:[%s5 + $0x478] sm:$0xff]
    %v962 = vld [vmem:[%s5 + $0x480] sm:$0xff]
    %v963 = vld [vmem:[%s5 + $0x488] sm:$0xff]
    %v964 = vld [vmem:[%s5 + $0x490] sm:$0xff]
    %v965 = vld [vmem:[%s5 + $0x498] sm:$0xff]
    %v966 = vld [vmem:[%s5 + $0x4a0] sm:$0xff]
    %v967 = vld [vmem:[%s5 + $0x4a8] sm:$0xff]
    %v968 = vld [vmem:[%s5 + $0x4b0] sm:$0xff]
    %v969 = vld [vmem:[%s5 + $0x4b8] sm:$0xff]
    %v970 = vld [vmem:[%s5 + $0x4c0] sm:$0xff]
    %v971 = vld [vmem:[%s5 + $0x4c8] sm:$0xff]
    %v972 = vld [vmem:[%s5 + $0x4d0] sm:$0xff]
    %v973 = vld [vmem:[%s5 + $0x4d8] sm:$0xff]
    %v974 = vld [vmem:[%s5 + $0x4e0] sm:$0xff]
    %v975 = vld [vmem:[%s5 + $0x4e8] sm:$0xff]
    %v976 = vld [vmem:[%s5 + $0x4f0] sm:$0xff]
    %v977 = vld [vmem:[%s5 + $0x4f8] sm:$0xff]
    %v978 = vld [vmem:[%s5 + $0x500] sm:$0xff]
    %v979 = vld [vmem:[%s5 + $0x508] sm:$0xff]
    %v980 = vld [vmem:[%s5 + $0x510] sm:$0xff]
    %v981 = vld [vmem:[%s5 + $0x518] sm:$0xff]
    %v982 = vld [vmem:[%s5 + $0x520] sm:$0xff]
    %v983 = vld [vmem:[%s5 + $0x528] sm:$0xff]
    %v984 = vld [vmem:[%s5 + $0x530] sm:$0xff]
    %v985 = vld [vmem:[%s5 + $0x538] sm:$0xff]
    %v986 = vld [vmem:[%s5 + $0x540] sm:$0xff]
    %v987 = vld [vmem:[%s5 + $0x548] sm:$0xff]
    %v988 = vld [vmem:[%s5 + $0x550] sm:$0xff]
    %v989 = vld [vmem:[%s5 + $0x558] sm:$0xff]
    %v990 = vld [vmem:[%s5 + $0x560] sm:$0xff]
    %v991 = vld [vmem:[%s5 + $0x568] sm:$0xff]
    %v992 = vld [vmem:[%s5 + $0x570] sm:$0xff]
    %v993 = vld [vmem:[%s5 + $0x578] sm:$0xff]
    %v994 = vld [vmem:[%s5 + $0x580] sm:$0xff]
    %v995 = vld [vmem:[%s5 + $0x588] sm:$0xff]
    %v996 = vld [vmem:[%s5 + $0x590] sm:$0xff]
    %v997 = vld [vmem:[%s5 + $0x598] sm:$0xff]
    %v998 = vld [vmem:[%s5 + $0x5a0] sm:$0xff]
    %v999 = vld [vmem:[%s5 + $0x5a8] sm:$0xff]
    %v1000 = vld [vmem:[%s5 + $0x5b0] sm:$0xff]
    %v1001 = vld [vmem:[%s5 + $0x5b8] sm:$0xff]
    %v1002 = vld [vmem:[%s5 + $0x5c0] sm:$0xff]
    %v1003 = vld [vmem:[%s5 + $0x5c8] sm:$0xff]
    %v1004 = vld [vmem:[%s5 + $0x5d0] sm:$0xff]
    %v1005 = vld [vmem:[%s5 + $0x5d8] sm:$0xff]
    %v1006 = vld [vmem:[%s5 + $0x5e0] sm:$0xff]
    %v1007 = vld [vmem:[%s5 + $0x5e8] sm:$0xff]
    %v1008 = vld [vmem:[%s5 + $0x5f0] sm:$0xff]
    %v1009 = vld [vmem:[%s5 + $0x5f8] sm:$0xff]
    %v1010 = vld [vmem:[%s5 + $0x600] sm:$0xff]
    %v1011 = vld [vmem:[%s5 + $0x608] sm:$0xff]
    %v1012 = vld [vmem:[%s5 + $0x610] sm:$0xff]
    %v1013 = vld [vmem:[%s5 + $0x618] sm:$0xff]
    %v1014 = vld [vmem:[%s5 + $0x620] sm:$0xff]
    %v1015 = vld [vmem:[%s5 + $0x628] sm:$0xff]
    %v1016 = vld [vmem:[%s5 + $0x630] sm:$0xff]
    %v1017 = vld [vmem:[%s5 + $0x638] sm:$0xff]
    %v1018 = vld [vmem:[%s5 + $0x640] sm:$0xff]
    %v1019 = vld [vmem:[%s5 + $0x648] sm:$0xff]
    %v1020 = vld [vmem:[%s5 + $0x650] sm:$0xff]
    %v1021 = vld [vmem:[%s5 + $0x658] sm:$0xff]
    %v1022 = vld [vmem:[%s5 + $0x660] sm:$0xff]
    %v1023 = vld [vmem:[%s5 + $0x668] sm:$0xff]
    %v1024 = vld [vmem:[%s5 + $0x670] sm:$0xff]
    %v1025 = vld [vmem:[%s5 + $0x678] sm:$0xff]
    %v1026 = vld [vmem:[%s5 + $0x680] sm:$0xff]
    %v1027 = vld [vmem:[%s5 + $0x688] sm:$0xff]
    %v1028 = vld [vmem:[%s6] sm:$0x3]
    %v1030 = vlaneseq
    %v1031 = vshrl.u32 %v1030, 7
    %v1032 = vsub.s32 0, %v1031
    %v1033 = vrot.slane %v1028, %v1032
    %v1034 = vlaneseq
    %v1035 = vshrl.u32 %v1034, 7
    %v1036 = vsub.s32 1, %v1035
    %v1037 = vrot.slane %v1028, %v1036
    %vm1040 = vcmask 588800
    %v1041 = vsel %vm1040, %v665, 0
    %v1044 = vsel %vm1040, %v817, 0
    %v1046 = vsel %vm1040, %v795, 0
    %1048 = vmatprep.subr.mxu0 %v849
    %1049 = vmatpush1.msra.mxu0 %v848
    %1050 = vmatprep.subr.mxu0 %v847
    %1051 = vmatpush1.msra.mxu0 %v846
    %1052 = vmatprep.subr.mxu0 %v845
    %1053 = vmatpush1.msra.mxu0 %v844
    %1054 = vmatprep.subr.mxu0 %v843
    %1055 = vmatpush1.msra.mxu0 %v842
    %1056 = vmatprep.subr.mxu0 %v841
    %1057 = vmatpush1.msra.mxu0 %v840
    %1058 = vmatprep.subr.mxu0 %v839
    %1059 = vmatpush1.msra.mxu0 %v838
    %1060 = vmatprep.subr.mxu0 %v837
    %1061 = vmatpush1.msra.mxu0 %v836
    %1062 = vmatprep.subr.mxu0 %v835
    %1063 = vmatpush1.msra.mxu0 %v834
    %1064 = vmatprep.subr.mxu0 %v833
    %1065 = vmatpush1.msra.mxu0 %v832
    %1066 = vmatprep.subr.mxu0 %v831
    %1067 = vmatpush1.msra.mxu0 %v830
    %1068 = vmatprep.subr.mxu0 %v829
    %1069 = vmatpush1.msra.mxu0 %v828
    %1070 = vmatprep.subr.mxu0 %v827
    %1071 = vmatpush1.msra.mxu0 %v826
    %1072 = vmatprep.subr.mxu0 %v825
    %1073 = vmatpush1.msra.mxu0 %v824
    %1074 = vmatprep.subr.mxu0 %v823
    %1075 = vmatpush1.msra.mxu0 %v822
    %1076 = vmatprep.subr.mxu0 %v821
    %1077 = vmatpush1.msra.mxu0 %v820
    %1078 = vmatprep.subr.mxu0 %v819
    %1079 = vmatpush1.msra.mxu0 %v818
    %1080 = vmatprep.subr.mxu0 %v881
    %1081 = vmatpush2.msra.mxu0 %v880
    %1082 = vmatprep.subr.mxu0 %v879
    %1083 = vmatpush2.msra.mxu0 %v878
    %1084 = vmatprep.subr.mxu0 %v877
    %1085 = vmatpush2.msra.mxu0 %v876
    %1086 = vmatprep.subr.mxu0 %v875
    %1087 = vmatpush2.msra.mxu0 %v874
    %1088 = vmatprep.subr.mxu0 %v873
    %1089 = vmatpush2.msra.mxu0 %v872
    %1090 = vmatprep.subr.mxu0 %v871
    %1091 = vmatpush2.msra.mxu0 %v870
    %1092 = vmatprep.subr.mxu0 %v869
    %1093 = vmatpush2.msra.mxu0 %v868
    %1094 = vmatprep.subr.mxu0 %v867
    %1095 = vmatpush2.msra.mxu0 %v866
    %1096 = vmatprep.subr.mxu0 %v865
    %1097 = vmatpush2.msra.mxu0 %v864
    %1098 = vmatprep.subr.mxu0 %v863
    %1099 = vmatpush2.msra.mxu0 %v862
    %1100 = vmatprep.subr.mxu0 %v861
    %1101 = vmatpush2.msra.mxu0 %v860
    %1102 = vmatprep.subr.mxu0 %v859
    %1103 = vmatpush2.msra.mxu0 %v858
    %1104 = vmatprep.subr.mxu0 %v857
    %1105 = vmatpush2.msra.mxu0 %v856
    %1106 = vmatprep.subr.mxu0 %v855
    %1107 = vmatpush2.msra.mxu0 %v854
    %1108 = vmatprep.subr.mxu0 %v853
    %1109 = vmatpush2.msra.mxu0 %v852
    %1110 = vmatprep.subr.mxu0 %v851
    %1111 = vmatpush2.msra.mxu0 %v850
    %1112 = vmatprep.mubr.f32.mxu0 %v670
    %1113 = vmatmul.mubr.f32.gmra.mxu0 %v560
    %v1114 = vpop.f32.mrf.mxu0
    %v1115 = vadd.f32 %v1033, %v1114
    %v1116 = vpop.f32.mrf.mxu0
    %v1117 = vadd.f32 %v1037, %v1116
    %1118 = vmatprep.mubr.f32.mxu0 %v812
    %1119 = vmatmul.mubr.f32.gmra.mxu0 %v811
    %v1120 = vpop.f32.mrf.mxu0
    %v1121 = vadd.f32 %v1033, %v1120
    %v1122 = vpop.f32.mrf.mxu0
    %v1123 = vadd.f32 %v1037, %v1122
    %1124 = vmatprep.mubr.f32.mxu0 %v780
    %1125 = vmatmul.mubr.f32.gmra.mxu0 %v744
    %v1126 = vpop.f32.mrf.mxu0
    %v1127 = vadd.f32 %v1033, %v1126
    %v1128 = vpop.f32.mrf.mxu0
    %v1129 = vadd.f32 %v1037, %v1128
    %1130 = vdwg.mxu0
    %1131 = vmatprep.subr.mxu0 %v913
    %1132 = vmatpush1.msra.mxu0 %v912
    %1133 = vmatprep.subr.mxu0 %v911
    %1134 = vmatpush1.msra.mxu0 %v910
    %1135 = vmatprep.subr.mxu0 %v909
    %1136 = vmatpush1.msra.mxu0 %v908
    %1137 = vmatprep.subr.mxu0 %v907
    %1138 = vmatpush1.msra.mxu0 %v906
    %1139 = vmatprep.subr.mxu0 %v905
    %1140 = vmatpush1.msra.mxu0 %v904
    %1141 = vmatprep.subr.mxu0 %v903
    %1142 = vmatpush1.msra.mxu0 %v902
    %1143 = vmatprep.subr.mxu0 %v901
    %1144 = vmatpush1.msra.mxu0 %v900
    %1145 = vmatprep.subr.mxu0 %v899
    %1146 = vmatpush1.msra.mxu0 %v898
    %1147 = vmatprep.subr.mxu0 %v897
    %1148 = vmatpush1.msra.mxu0 %v896
    %1149 = vmatprep.subr.mxu0 %v895
    %1150 = vmatpush1.msra.mxu0 %v894
    %1151 = vmatprep.subr.mxu0 %v893
    %1152 = vmatpush1.msra.mxu0 %v892
    %1153 = vmatprep.subr.mxu0 %v891
    %1154 = vmatpush1.msra.mxu0 %v890
    %1155 = vmatprep.subr.mxu0 %v889
    %1156 = vmatpush1.msra.mxu0 %v888
    %1157 = vmatprep.subr.mxu0 %v887
    %1158 = vmatpush1.msra.mxu0 %v886
    %1159 = vmatprep.subr.mxu0 %v885
    %1160 = vmatpush1.msra.mxu0 %v884
    %1161 = vmatprep.subr.mxu0 %v883
    %1162 = vmatpush1.msra.mxu0 %v882
    %1163 = vmatprep.subr.mxu0 %v945
    %1164 = vmatpush2.msra.mxu0 %v944
    %1165 = vmatprep.subr.mxu0 %v943
    %1166 = vmatpush2.msra.mxu0 %v942
    %1167 = vmatprep.subr.mxu0 %v941
    %1168 = vmatpush2.msra.mxu0 %v940
    %1169 = vmatprep.subr.mxu0 %v939
    %1170 = vmatpush2.msra.mxu0 %v938
    %1171 = vmatprep.subr.mxu0 %v937
    %1172 = vmatpush2.msra.mxu0 %v936
    %1173 = vmatprep.subr.mxu0 %v935
    %1174 = vmatpush2.msra.mxu0 %v934
    %1175 = vmatprep.subr.mxu0 %v933
    %1176 = vmatpush2.msra.mxu0 %v932
    %1177 = vmatprep.subr.mxu0 %v931
    %1178 = vmatpush2.msra.mxu0 %v930
    %1179 = vmatprep.subr.mxu0 %v929
    %1180 = vmatpush2.msra.mxu0 %v928
    %1181 = vmatprep.subr.mxu0 %v927
    %1182 = vmatpush2.msra.mxu0 %v926
    %1183 = vmatprep.subr.mxu0 %v925
    %1184 = vmatpush2.msra.mxu0 %v924
    %1185 = vmatprep.subr.mxu0 %v923
    %1186 = vmatpush2.msra.mxu0 %v922
    %1187 = vmatprep.subr.mxu0 %v921
    %1188 = vmatpush2.msra.mxu0 %v920
    %1189 = vmatprep.subr.mxu0 %v919
    %1190 = vmatpush2.msra.mxu0 %v918
    %1191 = vmatprep.subr.mxu0 %v917
    %1192 = vmatpush2.msra.mxu0 %v916
    %1193 = vmatprep.subr.mxu0 %v915
    %1194 = vmatpush2.msra.mxu0 %v914
    %1195 = vmatprep.mubr.f32.mxu0 %v674
    %1196 = vmatmul.mubr.f32.gmra.mxu0 %v672
    %v1197 = vpop.f32.mrf.mxu0
    %v1198 = vadd.f32 %v1115, %v1197
    %v1199 = vpop.f32.mrf.mxu0
    %v1200 = vadd.f32 %v1117, %v1199
    %1201 = vmatprep.mubr.f32.mxu0 %v814
    %1202 = vmatmul.mubr.f32.gmra.mxu0 %v813
    %v1203 = vpop.f32.mrf.mxu0
    %v1204 = vadd.f32 %v1121, %v1203
    %v1205 = vpop.f32.mrf.mxu0
    %v1206 = vadd.f32 %v1123, %v1205
    %1207 = vmatprep.mubr.f32.mxu0 %v786
    %1208 = vmatmul.mubr.f32.gmra.mxu0 %v783
    %v1209 = vpop.f32.mrf.mxu0
    %v1210 = vadd.f32 %v1127, %v1209
    %v1211 = vpop.f32.mrf.mxu0
    %v1212 = vadd.f32 %v1129, %v1211
    %1213 = vdwg.mxu0
    %1214 = vmatprep.subr.mxu0 %v977
    %1215 = vmatpush1.msra.mxu0 %v976
    %1216 = vmatprep.subr.mxu0 %v975
    %1217 = vmatpush1.msra.mxu0 %v974
    %1218 = vmatprep.subr.mxu0 %v973
    %1219 = vmatpush1.msra.mxu0 %v972
    %1220 = vmatprep.subr.mxu0 %v971
    %1221 = vmatpush1.msra.mxu0 %v970
    %1222 = vmatprep.subr.mxu0 %v969
    %1223 = vmatpush1.msra.mxu0 %v968
    %1224 = vmatprep.subr.mxu0 %v967
    %1225 = vmatpush1.msra.mxu0 %v966
    %1226 = vmatprep.subr.mxu0 %v965
    %1227 = vmatpush1.msra.mxu0 %v964
    %1228 = vmatprep.subr.mxu0 %v963
    %1229 = vmatpush1.msra.mxu0 %v962
    %1230 = vmatprep.subr.mxu0 %v961
    %1231 = vmatpush1.msra.mxu0 %v960
    %1232 = vmatprep.subr.mxu0 %v959
    %1233 = vmatpush1.msra.mxu0 %v958
    %1234 = vmatprep.subr.mxu0 %v957
    %1235 = vmatpush1.msra.mxu0 %v956
    %1236 = vmatprep.subr.mxu0 %v955
    %1237 = vmatpush1.msra.mxu0 %v954
    %1238 = vmatprep.subr.mxu0 %v953
    %1239 = vmatpush1.msra.mxu0 %v952
    %1240 = vmatprep.subr.mxu0 %v951
    %1241 = vmatpush1.msra.mxu0 %v950
    %1242 = vmatprep.subr.mxu0 %v949
    %1243 = vmatpush1.msra.mxu0 %v948
    %1244 = vmatprep.subr.mxu0 %v947
    %1245 = vmatpush1.msra.mxu0 %v946
    %1246 = vmatprep.subr.mxu0 %v1009
    %1247 = vmatpush2.msra.mxu0 %v1008
    %1248 = vmatprep.subr.mxu0 %v1007
    %1249 = vmatpush2.msra.mxu0 %v1006
    %1250 = vmatprep.subr.mxu0 %v1005
    %1251 = vmatpush2.msra.mxu0 %v1004
    %1252 = vmatprep.subr.mxu0 %v1003
    %1253 = vmatpush2.msra.mxu0 %v1002
    %1254 = vmatprep.subr.mxu0 %v1001
    %1255 = vmatpush2.msra.mxu0 %v1000
    %1256 = vmatprep.subr.mxu0 %v999
    %1257 = vmatpush2.msra.mxu0 %v998
    %1258 = vmatprep.subr.mxu0 %v997
    %1259 = vmatpush2.msra.mxu0 %v996
    %1260 = vmatprep.subr.mxu0 %v995
    %1261 = vmatpush2.msra.mxu0 %v994
    %1262 = vmatprep.subr.mxu0 %v993
    %1263 = vmatpush2.msra.mxu0 %v992
    %1264 = vmatprep.subr.mxu0 %v991
    %1265 = vmatpush2.msra.mxu0 %v990
    %1266 = vmatprep.subr.mxu0 %v989
    %1267 = vmatpush2.msra.mxu0 %v988
    %1268 = vmatprep.subr.mxu0 %v987
    %1269 = vmatpush2.msra.mxu0 %v986
    %1270 = vmatprep.subr.mxu0 %v985
    %1271 = vmatpush2.msra.mxu0 %v984
    %1272 = vmatprep.subr.mxu0 %v983
    %1273 = vmatpush2.msra.mxu0 %v982
    %1274 = vmatprep.subr.mxu0 %v981
    %1275 = vmatpush2.msra.mxu0 %v980
    %1276 = vmatprep.subr.mxu0 %v979
    %1277 = vmatpush2.msra.mxu0 %v978
    %1278 = vmatprep.mubr.f32.mxu0 %v676
    %1279 = vmatmul.mubr.f32.gmra.mxu0 %v643
    %v1280 = vpop.f32.mrf.mxu0
    %v1281 = vadd.f32 %v1198, %v1280
    %v1282 = vpop.f32.mrf.mxu0
    %v1283 = vadd.f32 %v1200, %v1282
    %1284 = vmatprep.mubr.f32.mxu0 %v816
    %1285 = vmatmul.mubr.f32.gmra.mxu0 %v815
    %v1286 = vpop.f32.mrf.mxu0
    %v1287 = vadd.f32 %v1204, %v1286
    %v1288 = vpop.f32.mrf.mxu0
    %v1289 = vadd.f32 %v1206, %v1288
    %1290 = vmatprep.mubr.f32.mxu0 %v792
    %1291 = vmatmul.mubr.f32.gmra.mxu0 %v789
    %v1292 = vpop.f32.mrf.mxu0
    %v1293 = vadd.f32 %v1210, %v1292
    %v1294 = vpop.f32.mrf.mxu0
    %v1295 = vadd.f32 %v1212, %v1294
    %1296 = vdwg.mxu0
    %1297 = vmatprep.subr.mxu0 0.0
    %1298 = vmatpush1.msra.mxu0 0.0
    %1299 = vmatprep.subr.mxu0 0.0
    %1300 = vmatpush1.msra.mxu0 0.0
    %1301 = vmatprep.subr.mxu0 0.0
    %1302 = vmatpush1.msra.mxu0 0.0
    %1303 = vmatprep.subr.mxu0 0.0
    %1304 = vmatpush1.msra.mxu0 0.0
    %1305 = vmatprep.subr.mxu0 0.0
    %1306 = vmatpush1.msra.mxu0 0.0
    %1307 = vmatprep.subr.mxu0 0.0
    %1308 = vmatpush1.msra.mxu0 0.0
    %1309 = vmatprep.subr.mxu0 0.0
    %1310 = vmatpush1.msra.mxu0 0.0
    %1311 = vmatprep.subr.mxu0 %v1027
    %1312 = vmatpush1.msra.mxu0 %v1026
    %1313 = vmatprep.subr.mxu0 %v1025
    %1314 = vmatpush1.msra.mxu0 %v1024
    %1315 = vmatprep.subr.mxu0 %v1023
    %1316 = vmatpush1.msra.mxu0 %v1022
    %1317 = vmatprep.subr.mxu0 %v1021
    %1318 = vmatpush1.msra.mxu0 %v1020
    %1319 = vmatprep.subr.mxu0 %v1019
    %1320 = vmatpush1.msra.mxu0 %v1018
    %1321 = vmatprep.subr.mxu0 %v1017
    %1322 = vmatpush1.msra.mxu0 %v1016
    %1323 = vmatprep.subr.mxu0 %v1015
    %1324 = vmatpush1.msra.mxu0 %v1014
    %1325 = vmatprep.subr.mxu0 %v1013
    %1326 = vmatpush1.msra.mxu0 %v1012
    %1327 = vmatprep.subr.mxu0 %v1011
    %1328 = vmatpush1.msra.mxu0 %v1010
    %1329 = vmatprep.subr.mxu0 0.0
    %1330 = vmatpush2.msra.mxu0 0.0
    %1331 = vmatprep.subr.mxu0 0.0
    %1332 = vmatpush2.msra.mxu0 0.0
    %1333 = vmatprep.subr.mxu0 0.0
    %1334 = vmatpush2.msra.mxu0 0.0
    %1335 = vmatprep.subr.mxu0 0.0
    %1336 = vmatpush2.msra.mxu0 0.0
    %1337 = vmatprep.subr.mxu0 0.0
    %1338 = vmatpush2.msra.mxu0 0.0
    %1339 = vmatprep.subr.mxu0 0.0
    %1340 = vmatpush2.msra.mxu0 0.0
    %1341 = vmatprep.subr.mxu0 0.0
    %1342 = vmatpush2.msra.mxu0 0.0
    %1343 = vmatprep.subr.mxu0 0.0
    %1344 = vmatpush2.msra.mxu0 0.0
    %1345 = vmatprep.subr.mxu0 0.0
    %1346 = vmatpush2.msra.mxu0 0.0
    %1347 = vmatprep.subr.mxu0 0.0
    %1348 = vmatpush2.msra.mxu0 0.0
    %1349 = vmatprep.subr.mxu0 0.0
    %1350 = vmatpush2.msra.mxu0 0.0
    %1351 = vmatprep.subr.mxu0 0.0
    %1352 = vmatpush2.msra.mxu0 0.0
    %1353 = vmatprep.subr.mxu0 0.0
    %1354 = vmatpush2.msra.mxu0 0.0
    %1355 = vmatprep.subr.mxu0 0.0
    %1356 = vmatpush2.msra.mxu0 0.0
    %1357 = vmatprep.subr.mxu0 0.0
    %1358 = vmatpush2.msra.mxu0 0.0
    %1359 = vmatprep.subr.mxu0 0.0
    %1360 = vmatpush2.msra.mxu0 0.0
    %1361 = vmatprep.mubr.f32.mxu0 0.0
    %1362 = vmatmul.mubr.f32.gmra.mxu0 %v1041
    %v1363 = vpop.f32.mrf.mxu0
    %v1364 = vadd.f32 %v1281, %v1363
    %v1365 = vpop.f32.mrf.mxu0
    %v1366 = vadd.f32 %v1283, %v1365
    %1367 = vmatprep.mubr.f32.mxu0 0.0
    %1368 = vmatmul.mubr.f32.gmra.mxu0 %v1044
    %v1369 = vpop.f32.mrf.mxu0
    %v1370 = vadd.f32 %v1287, %v1369
    %v1371 = vpop.f32.mrf.mxu0
    %v1372 = vadd.f32 %v1289, %v1371
    %1373 = vmatprep.mubr.f32.mxu0 0.0
    %1374 = vmatmul.mubr.f32.gmra.mxu0 %v1046
    %v1375 = vpop.f32.mrf.mxu0
    %v1376 = vadd.f32 %v1293, %v1375
    %v1377 = vpop.f32.mrf.mxu0
    %v1378 = vadd.f32 %v1295, %v1377
    %1379 = vdwg.mxu0
    %v1380 = vmul.f32 %v1364, 0.5
    %v1381 = vmul.f32 %v1366, 0.5
    %v1382 = vmul.f32 %v1370, 0.5
    %v1383 = vmul.f32 %v1372, 0.5
    %v1384 = vmul.f32 %v1376, 0.5
    %v1385 = vmul.f32 %v1378, 0.5
    %v1386 = vtanh.pop %v1380
    %v1387 = vtanh.pop %v1381
    %v1388 = vtanh.pop %v1382
    %v1389 = vtanh.pop %v1383
    %v1390 = vtanh.pop %v1384
    %v1391 = vtanh.pop %v1385
    %v1392 = vmul.f32 %v1386, 0.5
    %v1393 = vmul.f32 %v1387, 0.5
    %v1394 = vmul.f32 %v1388, 0.5
    %v1395 = vmul.f32 %v1389, 0.5
    %v1396 = vmul.f32 %v1390, 0.5
    %v1397 = vmul.f32 %v1391, 0.5
    %v1398 = vadd.f32 %v1392, 0.5
    %v1399 = vadd.f32 %v1393, 0.5
    %v1400 = vadd.f32 %v1394, 0.5
    %v1401 = vadd.f32 %v1395, 0.5
    %v1402 = vadd.f32 %v1396, 0.5
    %v1403 = vadd.f32 %v1397, 0.5
    %v1404 = vld [vmem:[%s2] sm:$0xff]
    %v1405 = vld [vmem:[%s2 + $0x8] sm:$0x3]
    %vm1406 = vcmask 162816
    %v1408 = vsel %vm1406, %v1404, 0
    %v1411 = vsel %vm1406, %v1405, 0
    %v1414 = vsel %vm117, %v1402, 0
    %v1417 = vsel %vm117, %v1403, 0
    %1419 = vmatprep.subr.mxu0 0.0
    %1420 = vmatpush1.msra.mxu0 0.0
    %1421 = vmatprep.subr.mxu0 0.0
    %1422 = vmatpush1.msra.mxu0 0.0
    %1423 = vmatprep.subr.mxu0 0.0
    %1424 = vmatpush1.msra.mxu0 0.0
    %1425 = vmatprep.subr.mxu0 0.0
    %1426 = vmatpush1.msra.mxu0 0.0
    %1427 = vmatprep.subr.mxu0 0.0
    %1428 = vmatpush1.msra.mxu0 0.0
    %1429 = vmatprep.subr.mxu0 0.0
    %1430 = vmatpush1.msra.mxu0 0.0
    %1431 = vmatprep.subr.mxu0 0.0
    %1432 = vmatpush1.msra.mxu0 0.0
    %1433 = vmatprep.subr.mxu0 0.0
    %1434 = vmatpush1.msra.mxu0 0.0
    %1435 = vmatprep.subr.mxu0 0.0
    %1436 = vmatpush1.msra.mxu0 0.0
    %1437 = vmatprep.subr.mxu0 0.0
    %1438 = vmatpush1.msra.mxu0 0.0
    %1439 = vmatprep.subr.mxu0 0.0
    %1440 = vmatpush1.msra.mxu0 0.0
    %1441 = vmatprep.subr.mxu0 0.0
    %1442 = vmatpush1.msra.mxu0 0.0
    %1443 = vmatprep.subr.mxu0 0.0
    %1444 = vmatpush1.msra.mxu0 0.0
    %1445 = vmatprep.subr.mxu0 %v1417
    %1446 = vmatpush1.msra.mxu0 %v1414
    %1447 = vmatprep.subr.mxu0 %v1401
    %1448 = vmatpush1.msra.mxu0 %v1400
    %1449 = vmatprep.subr.mxu0 %v1399
    %1450 = vmatpush1.msra.mxu0 %v1398
    %1451 = vmatprep.subr.mxu0 0.0
    %1452 = vmatpush2.msra.mxu0 0.0
    %1453 = vmatprep.subr.mxu0 0.0
    %1454 = vmatpush2.msra.mxu0 0.0
    %1455 = vmatprep.subr.mxu0 0.0
    %1456 = vmatpush2.msra.mxu0 0.0
    %1457 = vmatprep.subr.mxu0 0.0
    %1458 = vmatpush2.msra.mxu0 0.0
    %1459 = vmatprep.subr.mxu0 0.0
    %1460 = vmatpush2.msra.mxu0 0.0
    %1461 = vmatprep.subr.mxu0 0.0
    %1462 = vmatpush2.msra.mxu0 0.0
    %1463 = vmatprep.subr.mxu0 0.0
    %1464 = vmatpush2.msra.mxu0 0.0
    %1465 = vmatprep.subr.mxu0 0.0
    %1466 = vmatpush2.msra.mxu0 0.0
    %1467 = vmatprep.subr.mxu0 0.0
    %1468 = vmatpush2.msra.mxu0 0.0
    %1469 = vmatprep.subr.mxu0 0.0
    %1470 = vmatpush2.msra.mxu0 0.0
    %1471 = vmatprep.subr.mxu0 0.0
    %1472 = vmatpush2.msra.mxu0 0.0
    %1473 = vmatprep.subr.mxu0 0.0
    %1474 = vmatpush2.msra.mxu0 0.0
    %1475 = vmatprep.subr.mxu0 0.0
    %1476 = vmatpush2.msra.mxu0 0.0
    %1477 = vmatprep.subr.mxu0 0.0
    %1478 = vmatpush2.msra.mxu0 0.0
    %1479 = vmatprep.subr.mxu0 0.0
    %1480 = vmatpush2.msra.mxu0 0.0
    %1481 = vmatprep.subr.mxu0 0.0
    %1482 = vmatpush2.msra.mxu0 0.0
    %1483 = vmatprep.mubr.f32.mxu0 0.0
    %1484 = vmatmul.mubr.f32.gmra.mxu0 %v1408
    %v1485 = vpop.f32.mrf.mxu0
    %v1486 = vadd.f32 0.0, %v1485
    %v1487 = vpop.f32.mrf.mxu0
    %v1488 = vadd.f32 0.0, %v1487
    %1489 = vmatprep.mubr.f32.mxu0 0.0
    %1490 = vmatmul.mubr.f32.gmra.mxu0 %v1411
    %v1491 = vpop.f32.mrf.mxu0
    %v1492 = vadd.f32 0.0, %v1491
    %v1493 = vpop.f32.mrf.mxu0
    %v1494 = vadd.f32 0.0, %v1493
    %1495 = vdwg.mxu0
    %v1498 = vrot.slane %v1486, 1
    %v1499 = vrot.slane %v1488, 1
    %1500 = vrot.lane.b32.xlu0 %v1498, 32
    %v1501 = vpop.permute.xlu0 %1500
    %1502 = vrot.lane.b32.xlu0 %v1499, 32
    %v1503 = vpop.permute.xlu0 %1502
    %v1504 = vsel %vm126, %v1501, %v1503
    %v1507 = vrot.slane %v1486, 2
    %v1508 = vrot.slane %v1488, 2
    %1509 = vrot.lane.b32.xlu0 %v1507, 64
    %v1510 = vpop.permute.xlu0 %1509
    %1511 = vrot.lane.b32.xlu0 %v1508, 64
    %v1512 = vpop.permute.xlu0 %1511
    %v1513 = vsel %vm131, %v1510, %v1512
    %v1516 = vrot.slane %v1486, 3
    %v1517 = vrot.slane %v1488, 3
    %1518 = vrot.lane.b32.xlu0 %v1516, 96
    %v1519 = vpop.permute.xlu0 %1518
    %1520 = vrot.lane.b32.xlu0 %v1517, 96
    %v1521 = vpop.permute.xlu0 %1520
    %v1522 = vsel %vm136, %v1519, %v1521
    %v1525 = vrot.slane %v1486, 4
    %v1526 = vrot.slane %v1488, 4
    %v1529 = vsel %vm126, %v1488, %v1501
    %v1530 = vsel %vm131, %v1504, %v1510
    %v1531 = vsel %vm136, %v1513, %v1519
    %v1534 = vrot.slane %v1492, 3
    %v1535 = vrot.slane %v1494, 3
    %1536 = vrot.lane.b32.xlu0 %v1534, 96
    %v1537 = vpop.permute.xlu0 %1536
    %1538 = vrot.lane.b32.xlu0 %v1535, 96
    %v1539 = vpop.permute.xlu0 %1538
    %v1540 = vsel %vm136, %v1537, %v1539
    %v1542 = vrot.slane %v1492, 4
    %v1543 = vrot.slane %v1494, 4
    %v1544 = vsel %vm136, %v1513, %v1537
    %v1548 = vrot.slane %v1529, 4
    %v1549 = vrot.slane %v1530, 4
    %v1550 = vrot.slane %v1544, 4
    %v1551 = vrot.slane %v1540, 4
    %v1552 = vrot.slane %v1542, 4
    %v1553 = vrot.slane %v1543, 4
    %vm1560 = vcmask 1040384
    %v1561 = vsel %vm1560, %v1486, %v1525
    %v1562 = vsel %vm1560, %v1529, %v1548
    %v1563 = vsel %vm1560, %v1530, %v1549
    %v1564 = vsel %vm1560, %v1531, %v1550
    %v1565 = vsel %vm1560, %v1522, %v1551
    %v1566 = vsel %vm1560, %v1525, %v1552
    %v1567 = vsel %vm1560, %v1526, %v1553
    %v1568 = vld [vmem:[%s7] sm:$0xff]
    %v1569 = vld [vmem:[%s7 + $0x8] sm:$0xff]
    %v1570 = vld [vmem:[%s7 + $0x10] sm:$0xff]
    %v1571 = vld [vmem:[%s7 + $0x18] sm:$0xff]
    %v1572 = vld [vmem:[%s7 + $0x20] sm:$0xff]
    %v1573 = vld [vmem:[%s7 + $0x28] sm:$0xff]
    %v1574 = vld [vmem:[%s7 + $0x30] sm:$0xff]
    %v1575 = vld [vmem:[%s7 + $0x38] sm:$0xff]
    %v1576 = vld [vmem:[%s7 + $0x40] sm:$0xff]
    %v1577 = vld [vmem:[%s7 + $0x48] sm:$0xff]
    %v1578 = vld [vmem:[%s7 + $0x50] sm:$0xff]
    %v1579 = vld [vmem:[%s7 + $0x58] sm:$0xff]
    %v1580 = vld [vmem:[%s7 + $0x60] sm:$0xff]
    %v1581 = vld [vmem:[%s7 + $0x68] sm:$0xff]
    %v1582 = vld [vmem:[%s7 + $0x70] sm:$0xff]
    %v1583 = vld [vmem:[%s7 + $0x78] sm:$0xff]
    %v1584 = vld [vmem:[%s7 + $0x80] sm:$0xff]
    %v1585 = vld [vmem:[%s7 + $0x88] sm:$0xff]
    %v1586 = vld [vmem:[%s7 + $0x90] sm:$0xff]
    %v1587 = vld [vmem:[%s7 + $0x98] sm:$0xff]
    %v1588 = vld [vmem:[%s7 + $0xa0] sm:$0xff]
    %v1589 = vld [vmem:[%s7 + $0xa8] sm:$0xff]
    %v1590 = vld [vmem:[%s7 + $0xb0] sm:$0xff]
    %v1591 = vld [vmem:[%s7 + $0xb8] sm:$0xff]
    %v1592 = vld [vmem:[%s7 + $0xc0] sm:$0xff]
    %v1593 = vld [vmem:[%s7 + $0xc8] sm:$0xff]
    %v1594 = vld [vmem:[%s7 + $0xd0] sm:$0xff]
    %v1595 = vld [vmem:[%s7 + $0xd8] sm:$0xff]
    %v1596 = vld [vmem:[%s7 + $0xe0] sm:$0xff]
    %v1597 = vld [vmem:[%s7 + $0xe8] sm:$0xff]
    %v1598 = vld [vmem:[%s7 + $0xf0] sm:$0xff]
    %v1599 = vld [vmem:[%s7 + $0xf8] sm:$0xff]
    %v1600 = vld [vmem:[%s7 + $0x100] sm:$0xff]
    %v1601 = vld [vmem:[%s7 + $0x108] sm:$0xff]
    %v1602 = vld [vmem:[%s7 + $0x110] sm:$0xff]
    %v1603 = vld [vmem:[%s7 + $0x118] sm:$0xff]
    %v1604 = vld [vmem:[%s7 + $0x120] sm:$0xff]
    %v1605 = vld [vmem:[%s7 + $0x128] sm:$0xff]
    %v1606 = vld [vmem:[%s7 + $0x130] sm:$0xff]
    %v1607 = vld [vmem:[%s7 + $0x138] sm:$0xff]
    %v1608 = vld [vmem:[%s7 + $0x140] sm:$0xff]
    %v1609 = vld [vmem:[%s7 + $0x148] sm:$0xff]
    %v1610 = vld [vmem:[%s7 + $0x150] sm:$0xff]
    %v1611 = vld [vmem:[%s7 + $0x158] sm:$0xff]
    %v1612 = vld [vmem:[%s7 + $0x160] sm:$0xff]
    %v1613 = vld [vmem:[%s7 + $0x168] sm:$0xff]
    %v1614 = vld [vmem:[%s7 + $0x170] sm:$0xff]
    %v1615 = vld [vmem:[%s7 + $0x178] sm:$0xff]
    %v1616 = vld [vmem:[%s7 + $0x180] sm:$0xff]
    %v1617 = vld [vmem:[%s7 + $0x188] sm:$0xff]
    %v1618 = vld [vmem:[%s7 + $0x190] sm:$0xff]
    %v1619 = vld [vmem:[%s7 + $0x198] sm:$0xff]
    %v1620 = vld [vmem:[%s7 + $0x1a0] sm:$0xff]
    %v1621 = vld [vmem:[%s7 + $0x1a8] sm:$0xff]
    %v1622 = vld [vmem:[%s7 + $0x1b0] sm:$0xff]
    %v1623 = vld [vmem:[%s7 + $0x1b8] sm:$0xff]
    %v1624 = vld [vmem:[%s7 + $0x1c0] sm:$0xff]
    %v1625 = vld [vmem:[%s7 + $0x1c8] sm:$0xff]
    %v1626 = vld [vmem:[%s7 + $0x1d0] sm:$0xff]
    %v1627 = vld [vmem:[%s7 + $0x1d8] sm:$0xff]
    %v1628 = vld [vmem:[%s7 + $0x1e0] sm:$0xff]
    %v1629 = vld [vmem:[%s7 + $0x1e8] sm:$0xff]
    %v1630 = vld [vmem:[%s7 + $0x1f0] sm:$0xff]
    %v1631 = vld [vmem:[%s7 + $0x1f8] sm:$0xff]
    %v1632 = vld [vmem:[%s7 + $0x200] sm:$0xff]
    %v1633 = vld [vmem:[%s7 + $0x208] sm:$0xff]
    %v1634 = vld [vmem:[%s7 + $0x210] sm:$0xff]
    %v1635 = vld [vmem:[%s7 + $0x218] sm:$0xff]
    %v1636 = vld [vmem:[%s7 + $0x220] sm:$0xff]
    %v1637 = vld [vmem:[%s7 + $0x228] sm:$0xff]
    %v1638 = vld [vmem:[%s7 + $0x230] sm:$0xff]
    %v1639 = vld [vmem:[%s7 + $0x238] sm:$0xff]
    %v1640 = vld [vmem:[%s7 + $0x240] sm:$0xff]
    %v1641 = vld [vmem:[%s7 + $0x248] sm:$0xff]
    %v1642 = vld [vmem:[%s7 + $0x250] sm:$0xff]
    %v1643 = vld [vmem:[%s7 + $0x258] sm:$0xff]
    %v1644 = vld [vmem:[%s7 + $0x260] sm:$0xff]
    %v1645 = vld [vmem:[%s7 + $0x268] sm:$0xff]
    %v1646 = vld [vmem:[%s7 + $0x270] sm:$0xff]
    %v1647 = vld [vmem:[%s7 + $0x278] sm:$0xff]
    %v1648 = vld [vmem:[%s7 + $0x280] sm:$0xff]
    %v1649 = vld [vmem:[%s7 + $0x288] sm:$0xff]
    %v1650 = vld [vmem:[%s7 + $0x290] sm:$0xff]
    %v1651 = vld [vmem:[%s7 + $0x298] sm:$0xff]
    %v1652 = vld [vmem:[%s7 + $0x2a0] sm:$0xff]
    %v1653 = vld [vmem:[%s7 + $0x2a8] sm:$0xff]
    %v1654 = vld [vmem:[%s7 + $0x2b0] sm:$0xff]
    %v1655 = vld [vmem:[%s7 + $0x2b8] sm:$0xff]
    %v1656 = vld [vmem:[%s7 + $0x2c0] sm:$0xff]
    %v1657 = vld [vmem:[%s7 + $0x2c8] sm:$0xff]
    %v1658 = vld [vmem:[%s7 + $0x2d0] sm:$0xff]
    %v1659 = vld [vmem:[%s7 + $0x2d8] sm:$0xff]
    %v1660 = vld [vmem:[%s7 + $0x2e0] sm:$0xff]
    %v1661 = vld [vmem:[%s7 + $0x2e8] sm:$0xff]
    %v1662 = vld [vmem:[%s7 + $0x2f0] sm:$0xff]
    %v1663 = vld [vmem:[%s7 + $0x2f8] sm:$0xff]
    %v1664 = vld [vmem:[%s7 + $0x300] sm:$0xff]
    %v1665 = vld [vmem:[%s7 + $0x308] sm:$0xff]
    %v1666 = vld [vmem:[%s7 + $0x310] sm:$0xff]
    %v1667 = vld [vmem:[%s7 + $0x318] sm:$0xff]
    %v1668 = vld [vmem:[%s8] sm:$0x1]
    %v1670 = vlaneseq
    %v1671 = vshrl.u32 %v1670, 7
    %v1672 = vsub.s32 0, %v1671
    %v1673 = vrot.slane %v1668, %v1672
    %v1676 = vsel %vm126, %v1567, 0
    %1678 = vmatprep.subr.mxu0 0.0
    %1679 = vmatpush1.msra.mxu0 %v1583
    %1680 = vmatprep.subr.mxu0 0.0
    %1681 = vmatpush1.msra.mxu0 %v1582
    %1682 = vmatprep.subr.mxu0 0.0
    %1683 = vmatpush1.msra.mxu0 %v1581
    %1684 = vmatprep.subr.mxu0 0.0
    %1685 = vmatpush1.msra.mxu0 %v1580
    %1686 = vmatprep.subr.mxu0 0.0
    %1687 = vmatpush1.msra.mxu0 %v1579
    %1688 = vmatprep.subr.mxu0 0.0
    %1689 = vmatpush1.msra.mxu0 %v1578
    %1690 = vmatprep.subr.mxu0 0.0
    %1691 = vmatpush1.msra.mxu0 %v1577
    %1692 = vmatprep.subr.mxu0 0.0
    %1693 = vmatpush1.msra.mxu0 %v1576
    %1694 = vmatprep.subr.mxu0 0.0
    %1695 = vmatpush1.msra.mxu0 %v1575
    %1696 = vmatprep.subr.mxu0 0.0
    %1697 = vmatpush1.msra.mxu0 %v1574
    %1698 = vmatprep.subr.mxu0 0.0
    %1699 = vmatpush1.msra.mxu0 %v1573
    %1700 = vmatprep.subr.mxu0 0.0
    %1701 = vmatpush1.msra.mxu0 %v1572
    %1702 = vmatprep.subr.mxu0 0.0
    %1703 = vmatpush1.msra.mxu0 %v1571
    %1704 = vmatprep.subr.mxu0 0.0
    %1705 = vmatpush1.msra.mxu0 %v1570
    %1706 = vmatprep.subr.mxu0 0.0
    %1707 = vmatpush1.msra.mxu0 %v1569
    %1708 = vmatprep.subr.mxu0 0.0
    %1709 = vmatpush1.msra.mxu0 %v1568
    %1710 = vmatprep.subr.mxu0 0.0
    %1711 = vmatpush2.msra.mxu0 %v1599
    %1712 = vmatprep.subr.mxu0 0.0
    %1713 = vmatpush2.msra.mxu0 %v1598
    %1714 = vmatprep.subr.mxu0 0.0
    %1715 = vmatpush2.msra.mxu0 %v1597
    %1716 = vmatprep.subr.mxu0 0.0
    %1717 = vmatpush2.msra.mxu0 %v1596
    %1718 = vmatprep.subr.mxu0 0.0
    %1719 = vmatpush2.msra.mxu0 %v1595
    %1720 = vmatprep.subr.mxu0 0.0
    %1721 = vmatpush2.msra.mxu0 %v1594
    %1722 = vmatprep.subr.mxu0 0.0
    %1723 = vmatpush2.msra.mxu0 %v1593
    %1724 = vmatprep.subr.mxu0 0.0
    %1725 = vmatpush2.msra.mxu0 %v1592
    %1726 = vmatprep.subr.mxu0 0.0
    %1727 = vmatpush2.msra.mxu0 %v1591
    %1728 = vmatprep.subr.mxu0 0.0
    %1729 = vmatpush2.msra.mxu0 %v1590
    %1730 = vmatprep.subr.mxu0 0.0
    %1731 = vmatpush2.msra.mxu0 %v1589
    %1732 = vmatprep.subr.mxu0 0.0
    %1733 = vmatpush2.msra.mxu0 %v1588
    %1734 = vmatprep.subr.mxu0 0.0
    %1735 = vmatpush2.msra.mxu0 %v1587
    %1736 = vmatprep.subr.mxu0 0.0
    %1737 = vmatpush2.msra.mxu0 %v1586
    %1738 = vmatprep.subr.mxu0 0.0
    %1739 = vmatpush2.msra.mxu0 %v1585
    %1740 = vmatprep.subr.mxu0 0.0
    %1741 = vmatpush2.msra.mxu0 %v1584
    %1742 = vmatprep.mubr.f32.mxu0 %v1562
    %1743 = vmatmul.mubr.f32.gmra.mxu0 %v1561
    %v1744 = vpop.f32.mrf.mxu0
    %v1745 = vadd.f32 %v1673, %v1744
    %v1746 = vpop.f32.mrf.mxu0
    %1747 = vdwg.mxu0
    %1748 = vmatprep.subr.mxu0 0.0
    %1749 = vmatpush1.msra.mxu0 %v1615
    %1750 = vmatprep.subr.mxu0 0.0
    %1751 = vmatpush1.msra.mxu0 %v1614
    %1752 = vmatprep.subr.mxu0 0.0
    %1753 = vmatpush1.msra.mxu0 %v1613
    %1754 = vmatprep.subr.mxu0 0.0
    %1755 = vmatpush1.msra.mxu0 %v1612
    %1756 = vmatprep.subr.mxu0 0.0
    %1757 = vmatpush1.msra.mxu0 %v1611
    %1758 = vmatprep.subr.mxu0 0.0
    %1759 = vmatpush1.msra.mxu0 %v1610
    %1760 = vmatprep.subr.mxu0 0.0
    %1761 = vmatpush1.msra.mxu0 %v1609
    %1762 = vmatprep.subr.mxu0 0.0
    %1763 = vmatpush1.msra.mxu0 %v1608
    %1764 = vmatprep.subr.mxu0 0.0
    %1765 = vmatpush1.msra.mxu0 %v1607
    %1766 = vmatprep.subr.mxu0 0.0
    %1767 = vmatpush1.msra.mxu0 %v1606
    %1768 = vmatprep.subr.mxu0 0.0
    %1769 = vmatpush1.msra.mxu0 %v1605
    %1770 = vmatprep.subr.mxu0 0.0
    %1771 = vmatpush1.msra.mxu0 %v1604
    %1772 = vmatprep.subr.mxu0 0.0
    %1773 = vmatpush1.msra.mxu0 %v1603
    %1774 = vmatprep.subr.mxu0 0.0
    %1775 = vmatpush1.msra.mxu0 %v1602
    %1776 = vmatprep.subr.mxu0 0.0
    %1777 = vmatpush1.msra.mxu0 %v1601
    %1778 = vmatprep.subr.mxu0 0.0
    %1779 = vmatpush1.msra.mxu0 %v1600
    %1780 = vmatprep.subr.mxu0 0.0
    %1781 = vmatpush2.msra.mxu0 %v1631
    %1782 = vmatprep.subr.mxu0 0.0
    %1783 = vmatpush2.msra.mxu0 %v1630
    %1784 = vmatprep.subr.mxu0 0.0
    %1785 = vmatpush2.msra.mxu0 %v1629
    %1786 = vmatprep.subr.mxu0 0.0
    %1787 = vmatpush2.msra.mxu0 %v1628
    %1788 = vmatprep.subr.mxu0 0.0
    %1789 = vmatpush2.msra.mxu0 %v1627
    %1790 = vmatprep.subr.mxu0 0.0
    %1791 = vmatpush2.msra.mxu0 %v1626
    %1792 = vmatprep.subr.mxu0 0.0
    %1793 = vmatpush2.msra.mxu0 %v1625
    %1794 = vmatprep.subr.mxu0 0.0
    %1795 = vmatpush2.msra.mxu0 %v1624
    %1796 = vmatprep.subr.mxu0 0.0
    %1797 = vmatpush2.msra.mxu0 %v1623
    %1798 = vmatprep.subr.mxu0 0.0
    %1799 = vmatpush2.msra.mxu0 %v1622
    %1800 = vmatprep.subr.mxu0 0.0
    %1801 = vmatpush2.msra.mxu0 %v1621
    %1802 = vmatprep.subr.mxu0 0.0
    %1803 = vmatpush2.msra.mxu0 %v1620
    %1804 = vmatprep.subr.mxu0 0.0
    %1805 = vmatpush2.msra.mxu0 %v1619
    %1806 = vmatprep.subr.mxu0 0.0
    %1807 = vmatpush2.msra.mxu0 %v1618
    %1808 = vmatprep.subr.mxu0 0.0
    %1809 = vmatpush2.msra.mxu0 %v1617
    %1810 = vmatprep.subr.mxu0 0.0
    %1811 = vmatpush2.msra.mxu0 %v1616
    %1812 = vmatprep.mubr.f32.mxu0 %v1564
    %1813 = vmatmul.mubr.f32.gmra.mxu0 %v1563
    %v1814 = vpop.f32.mrf.mxu0
    %v1815 = vadd.f32 %v1745, %v1814
    %v1816 = vpop.f32.mrf.mxu0
    %1817 = vdwg.mxu0
    %1818 = vmatprep.subr.mxu0 0.0
    %1819 = vmatpush1.msra.mxu0 %v1647
    %1820 = vmatprep.subr.mxu0 0.0
    %1821 = vmatpush1.msra.mxu0 %v1646
    %1822 = vmatprep.subr.mxu0 0.0
    %1823 = vmatpush1.msra.mxu0 %v1645
    %1824 = vmatprep.subr.mxu0 0.0
    %1825 = vmatpush1.msra.mxu0 %v1644
    %1826 = vmatprep.subr.mxu0 0.0
    %1827 = vmatpush1.msra.mxu0 %v1643
    %1828 = vmatprep.subr.mxu0 0.0
    %1829 = vmatpush1.msra.mxu0 %v1642
    %1830 = vmatprep.subr.mxu0 0.0
    %1831 = vmatpush1.msra.mxu0 %v1641
    %1832 = vmatprep.subr.mxu0 0.0
    %1833 = vmatpush1.msra.mxu0 %v1640
    %1834 = vmatprep.subr.mxu0 0.0
    %1835 = vmatpush1.msra.mxu0 %v1639
    %1836 = vmatprep.subr.mxu0 0.0
    %1837 = vmatpush1.msra.mxu0 %v1638
    %1838 = vmatprep.subr.mxu0 0.0
    %1839 = vmatpush1.msra.mxu0 %v1637
    %1840 = vmatprep.subr.mxu0 0.0
    %1841 = vmatpush1.msra.mxu0 %v1636
    %1842 = vmatprep.subr.mxu0 0.0
    %1843 = vmatpush1.msra.mxu0 %v1635
    %1844 = vmatprep.subr.mxu0 0.0
    %1845 = vmatpush1.msra.mxu0 %v1634
    %1846 = vmatprep.subr.mxu0 0.0
    %1847 = vmatpush1.msra.mxu0 %v1633
    %1848 = vmatprep.subr.mxu0 0.0
    %1849 = vmatpush1.msra.mxu0 %v1632
    %1850 = vmatprep.subr.mxu0 0.0
    %1851 = vmatpush2.msra.mxu0 %v1663
    %1852 = vmatprep.subr.mxu0 0.0
    %1853 = vmatpush2.msra.mxu0 %v1662
    %1854 = vmatprep.subr.mxu0 0.0
    %1855 = vmatpush2.msra.mxu0 %v1661
    %1856 = vmatprep.subr.mxu0 0.0
    %1857 = vmatpush2.msra.mxu0 %v1660
    %1858 = vmatprep.subr.mxu0 0.0
    %1859 = vmatpush2.msra.mxu0 %v1659
    %1860 = vmatprep.subr.mxu0 0.0
    %1861 = vmatpush2.msra.mxu0 %v1658
    %1862 = vmatprep.subr.mxu0 0.0
    %1863 = vmatpush2.msra.mxu0 %v1657
    %1864 = vmatprep.subr.mxu0 0.0
    %1865 = vmatpush2.msra.mxu0 %v1656
    %1866 = vmatprep.subr.mxu0 0.0
    %1867 = vmatpush2.msra.mxu0 %v1655
    %1868 = vmatprep.subr.mxu0 0.0
    %1869 = vmatpush2.msra.mxu0 %v1654
    %1870 = vmatprep.subr.mxu0 0.0
    %1871 = vmatpush2.msra.mxu0 %v1653
    %1872 = vmatprep.subr.mxu0 0.0
    %1873 = vmatpush2.msra.mxu0 %v1652
    %1874 = vmatprep.subr.mxu0 0.0
    %1875 = vmatpush2.msra.mxu0 %v1651
    %1876 = vmatprep.subr.mxu0 0.0
    %1877 = vmatpush2.msra.mxu0 %v1650
    %1878 = vmatprep.subr.mxu0 0.0
    %1879 = vmatpush2.msra.mxu0 %v1649
    %1880 = vmatprep.subr.mxu0 0.0
    %1881 = vmatpush2.msra.mxu0 %v1648
    %1882 = vmatprep.mubr.f32.mxu0 %v1566
    %1883 = vmatmul.mubr.f32.gmra.mxu0 %v1565
    %v1884 = vpop.f32.mrf.mxu0
    %v1885 = vadd.f32 %v1815, %v1884
    %v1886 = vpop.f32.mrf.mxu0
    %1887 = vdwg.mxu0
    %1888 = vmatprep.subr.mxu0 0.0
    %1889 = vmatpush1.msra.mxu0 0.0
    %1890 = vmatprep.subr.mxu0 0.0
    %1891 = vmatpush1.msra.mxu0 0.0
    %1892 = vmatprep.subr.mxu0 0.0
    %1893 = vmatpush1.msra.mxu0 0.0
    %1894 = vmatprep.subr.mxu0 0.0
    %1895 = vmatpush1.msra.mxu0 0.0
    %1896 = vmatprep.subr.mxu0 0.0
    %1897 = vmatpush1.msra.mxu0 0.0
    %1898 = vmatprep.subr.mxu0 0.0
    %1899 = vmatpush1.msra.mxu0 0.0
    %1900 = vmatprep.subr.mxu0 0.0
    %1901 = vmatpush1.msra.mxu0 0.0
    %1902 = vmatprep.subr.mxu0 0.0
    %1903 = vmatpush1.msra.mxu0 0.0
    %1904 = vmatprep.subr.mxu0 0.0
    %1905 = vmatpush1.msra.mxu0 0.0
    %1906 = vmatprep.subr.mxu0 0.0
    %1907 = vmatpush1.msra.mxu0 0.0
    %1908 = vmatprep.subr.mxu0 0.0
    %1909 = vmatpush1.msra.mxu0 0.0
    %1910 = vmatprep.subr.mxu0 0.0
    %1911 = vmatpush1.msra.mxu0 0.0
    %1912 = vmatprep.subr.mxu0 0.0
    %1913 = vmatpush1.msra.mxu0 %v1667
    %1914 = vmatprep.subr.mxu0 0.0
    %1915 = vmatpush1.msra.mxu0 %v1666
    %1916 = vmatprep.subr.mxu0 0.0
    %1917 = vmatpush1.msra.mxu0 %v1665
    %1918 = vmatprep.subr.mxu0 0.0
    %1919 = vmatpush1.msra.mxu0 %v1664
    %1920 = vmatprep.subr.mxu0 0.0
    %1921 = vmatpush2.msra.mxu0 0.0
    %1922 = vmatprep.subr.mxu0 0.0
    %1923 = vmatpush2.msra.mxu0 0.0
    %1924 = vmatprep.subr.mxu0 0.0
    %1925 = vmatpush2.msra.mxu0 0.0
    %1926 = vmatprep.subr.mxu0 0.0
    %1927 = vmatpush2.msra.mxu0 0.0
    %1928 = vmatprep.subr.mxu0 0.0
    %1929 = vmatpush2.msra.mxu0 0.0
    %1930 = vmatprep.subr.mxu0 0.0
    %1931 = vmatpush2.msra.mxu0 0.0
    %1932 = vmatprep.subr.mxu0 0.0
    %1933 = vmatpush2.msra.mxu0 0.0
    %1934 = vmatprep.subr.mxu0 0.0
    %1935 = vmatpush2.msra.mxu0 0.0
    %1936 = vmatprep.subr.mxu0 0.0
    %1937 = vmatpush2.msra.mxu0 0.0
    %1938 = vmatprep.subr.mxu0 0.0
    %1939 = vmatpush2.msra.mxu0 0.0
    %1940 = vmatprep.subr.mxu0 0.0
    %1941 = vmatpush2.msra.mxu0 0.0
    %1942 = vmatprep.subr.mxu0 0.0
    %1943 = vmatpush2.msra.mxu0 0.0
    %1944 = vmatprep.subr.mxu0 0.0
    %1945 = vmatpush2.msra.mxu0 0.0
    %1946 = vmatprep.subr.mxu0 0.0
    %1947 = vmatpush2.msra.mxu0 0.0
    %1948 = vmatprep.subr.mxu0 0.0
    %1949 = vmatpush2.msra.mxu0 0.0
    %1950 = vmatprep.subr.mxu0 0.0
    %1951 = vmatpush2.msra.mxu0 0.0
    %1952 = vmatprep.mubr.f32.mxu0 0.0
    %1953 = vmatmul.mubr.f32.gmra.mxu0 %v1676
    %v1954 = vpop.f32.mrf.mxu0
    %v1955 = vadd.f32 %v1885, %v1954
    %v1956 = vpop.f32.mrf.mxu0
    %1957 = vdwg.mxu0
    %v1958 = vmul.f32 %v1955, 0.5
    %v1959 = vtanh.pop %v1958
    %v1960 = vmul.f32 %v1959, 0.5
    %v1961 = vadd.f32 %v1960, 0.5
    %v1962 = vld [vmem:[%s9] sm:$0xff]
    %v1963 = vld [vmem:[%s9 + $0x8] sm:$0xff]
    %v1964 = vld [vmem:[%s9 + $0x10] sm:$0xff]
    %v1965 = vld [vmem:[%s9 + $0x18] sm:$0xff]
    %v1966 = vld [vmem:[%s9 + $0x20] sm:$0xff]
    %v1967 = vld [vmem:[%s9 + $0x28] sm:$0xff]
    %v1968 = vld [vmem:[%s9 + $0x30] sm:$0xff]
    %v1969 = vld [vmem:[%s9 + $0x38] sm:$0xff]
    %v1970 = vld [vmem:[%s9 + $0x40] sm:$0xff]
    %v1971 = vld [vmem:[%s9 + $0x48] sm:$0xff]
    %v1972 = vld [vmem:[%s9 + $0x50] sm:$0xff]
    %v1973 = vld [vmem:[%s9 + $0x58] sm:$0xff]
    %v1974 = vld [vmem:[%s9 + $0x60] sm:$0xff]
    %v1975 = vld [vmem:[%s9 + $0x68] sm:$0xff]
    %v1976 = vld [vmem:[%s9 + $0x70] sm:$0xff]
    %v1977 = vld [vmem:[%s10] sm:$0x1]
    %v1979 = vlaneseq
    %v1980 = vshrl.u32 %v1979, 7
    %v1981 = vsub.s32 0, %v1980
    %v1982 = vrot.slane %v1977, %v1981
    %v1985 = vsel %vm642, %v1961, 0
    %1987 = vmatprep.subr.mxu0 0.0
    %1988 = vmatpush1.msra.mxu0 0.0
    %1989 = vmatprep.subr.mxu0 0.0
    %1990 = vmatpush1.msra.mxu0 %v1976
    %1991 = vmatprep.subr.mxu0 0.0
    %1992 = vmatpush1.msra.mxu0 %v1975
    %1993 = vmatprep.subr.mxu0 0.0
    %1994 = vmatpush1.msra.mxu0 %v1974
    %1995 = vmatprep.subr.mxu0 0.0
    %1996 = vmatpush1.msra.mxu0 %v1973
    %1997 = vmatprep.subr.mxu0 0.0
    %1998 = vmatpush1.msra.mxu0 %v1972
    %1999 = vmatprep.subr.mxu0 0.0
    %2000 = vmatpush1.msra.mxu0 %v1971
    %2001 = vmatprep.subr.mxu0 0.0
    %2002 = vmatpush1.msra.mxu0 %v1970
    %2003 = vmatprep.subr.mxu0 0.0
    %2004 = vmatpush1.msra.mxu0 %v1969
    %2005 = vmatprep.subr.mxu0 0.0
    %2006 = vmatpush1.msra.mxu0 %v1968
    %2007 = vmatprep.subr.mxu0 0.0
    %2008 = vmatpush1.msra.mxu0 %v1967
    %2009 = vmatprep.subr.mxu0 0.0
    %2010 = vmatpush1.msra.mxu0 %v1966
    %2011 = vmatprep.subr.mxu0 0.0
    %2012 = vmatpush1.msra.mxu0 %v1965
    %2013 = vmatprep.subr.mxu0 0.0
    %2014 = vmatpush1.msra.mxu0 %v1964
    %2015 = vmatprep.subr.mxu0 0.0
    %2016 = vmatpush1.msra.mxu0 %v1963
    %2017 = vmatprep.subr.mxu0 0.0
    %2018 = vmatpush1.msra.mxu0 %v1962
    %2019 = vmatprep.subr.mxu0 0.0
    %2020 = vmatpush2.msra.mxu0 0.0
    %2021 = vmatprep.subr.mxu0 0.0
    %2022 = vmatpush2.msra.mxu0 0.0
    %2023 = vmatprep.subr.mxu0 0.0
    %2024 = vmatpush2.msra.mxu0 0.0
    %2025 = vmatprep.subr.mxu0 0.0
    %2026 = vmatpush2.msra.mxu0 0.0
    %2027 = vmatprep.subr.mxu0 0.0
    %2028 = vmatpush2.msra.mxu0 0.0
    %2029 = vmatprep.subr.mxu0 0.0
    %2030 = vmatpush2.msra.mxu0 0.0
    %2031 = vmatprep.subr.mxu0 0.0
    %2032 = vmatpush2.msra.mxu0 0.0
    %2033 = vmatprep.subr.mxu0 0.0
    %2034 = vmatpush2.msra.mxu0 0.0
    %2035 = vmatprep.subr.mxu0 0.0
    %2036 = vmatpush2.msra.mxu0 0.0
    %2037 = vmatprep.subr.mxu0 0.0
    %2038 = vmatpush2.msra.mxu0 0.0
    %2039 = vmatprep.subr.mxu0 0.0
    %2040 = vmatpush2.msra.mxu0 0.0
    %2041 = vmatprep.subr.mxu0 0.0
    %2042 = vmatpush2.msra.mxu0 0.0
    %2043 = vmatprep.subr.mxu0 0.0
    %2044 = vmatpush2.msra.mxu0 0.0
    %2045 = vmatprep.subr.mxu0 0.0
    %2046 = vmatpush2.msra.mxu0 0.0
    %2047 = vmatprep.subr.mxu0 0.0
    %2048 = vmatpush2.msra.mxu0 0.0
    %2049 = vmatprep.subr.mxu0 0.0
    %2050 = vmatpush2.msra.mxu0 0.0
    %2051 = vmatprep.mubr.f32.mxu0 0.0
    %2052 = vmatmul.mubr.f32.gmra.mxu0 %v1985
    %v2053 = vpop.f32.mrf.mxu0
    %v2054 = vadd.f32 %v1982, %v2053
    %v2055 = vpop.f32.mrf.mxu0
    %2056 = vdwg.mxu0
    %v2057 = vmul.f32 %v2054, 0.5
    %v2058 = vtanh.pop %v2057
    %v2059 = vmul.f32 %v2058, 0.5
    %v2060 = vadd.f32 %v2059, 0.5
    %v2061 = vld [vmem:[%s11] sm:$0xff]
    %v2062 = vld [vmem:[%s11 + $0x8] sm:$0xff]
    %v2063 = vld [vmem:[%s11 + $0x10] sm:$0xff]
    %v2064 = vld [vmem:[%s11 + $0x18] sm:$0xff]
    %v2065 = vld [vmem:[%s11 + $0x20] sm:$0xff]
    %v2066 = vld [vmem:[%s11 + $0x28] sm:$0xff]
    %v2067 = vld [vmem:[%s11 + $0x30] sm:$0xff]
    %v2068 = vld [vmem:[%s11 + $0x38] sm:$0xff]
    %v2069 = vld [vmem:[%s11 + $0x40] sm:$0xff]
    %v2070 = vld [vmem:[%s11 + $0x48] sm:$0xff]
    %v2071 = vld [vmem:[%s11 + $0x50] sm:$0xf]
    %v2072 = vld [vmem:[%s12] sm:$0x1]
    %v2074 = vlaneseq
    %v2075 = vshrl.u32 %v2074, 7
    %v2076 = vsub.s32 0, %v2075
    %v2077 = vrot.slane %v2072, %v2076
    %vm2079 = vcmask 687104
    %v2081 = vsel %vm2079, %v2060, 0
    %v2084 = vsel %vm117, %v2071, 0
    %2086 = vmatprep.subr.mxu0 0.0
    %2087 = vmatpush1.msra.mxu0 0.0
    %2088 = vmatprep.subr.mxu0 0.0
    %2089 = vmatpush1.msra.mxu0 0.0
    %2090 = vmatprep.subr.mxu0 0.0
    %2091 = vmatpush1.msra.mxu0 0.0
    %2092 = vmatprep.subr.mxu0 0.0
    %2093 = vmatpush1.msra.mxu0 0.0
    %2094 = vmatprep.subr.mxu0 0.0
    %2095 = vmatpush1.msra.mxu0 0.0
    %2096 = vmatprep.subr.mxu0 0.0
    %2097 = vmatpush1.msra.mxu0 %v2084
    %2098 = vmatprep.subr.mxu0 0.0
    %2099 = vmatpush1.msra.mxu0 %v2070
    %2100 = vmatprep.subr.mxu0 0.0
    %2101 = vmatpush1.msra.mxu0 %v2069
    %2102 = vmatprep.subr.mxu0 0.0
    %2103 = vmatpush1.msra.mxu0 %v2068
    %2104 = vmatprep.subr.mxu0 0.0
    %2105 = vmatpush1.msra.mxu0 %v2067
    %2106 = vmatprep.subr.mxu0 0.0
    %2107 = vmatpush1.msra.mxu0 %v2066
    %2108 = vmatprep.subr.mxu0 0.0
    %2109 = vmatpush1.msra.mxu0 %v2065
    %2110 = vmatprep.subr.mxu0 0.0
    %2111 = vmatpush1.msra.mxu0 %v2064
    %2112 = vmatprep.subr.mxu0 0.0
    %2113 = vmatpush1.msra.mxu0 %v2063
    %2114 = vmatprep.subr.mxu0 0.0
    %2115 = vmatpush1.msra.mxu0 %v2062
    %2116 = vmatprep.subr.mxu0 0.0
    %2117 = vmatpush1.msra.mxu0 %v2061
    %2118 = vmatprep.subr.mxu0 0.0
    %2119 = vmatpush2.msra.mxu0 0.0
    %2120 = vmatprep.subr.mxu0 0.0
    %2121 = vmatpush2.msra.mxu0 0.0
    %2122 = vmatprep.subr.mxu0 0.0
    %2123 = vmatpush2.msra.mxu0 0.0
    %2124 = vmatprep.subr.mxu0 0.0
    %2125 = vmatpush2.msra.mxu0 0.0
    %2126 = vmatprep.subr.mxu0 0.0
    %2127 = vmatpush2.msra.mxu0 0.0
    %2128 = vmatprep.subr.mxu0 0.0
    %2129 = vmatpush2.msra.mxu0 0.0
    %2130 = vmatprep.subr.mxu0 0.0
    %2131 = vmatpush2.msra.mxu0 0.0
    %2132 = vmatprep.subr.mxu0 0.0
    %2133 = vmatpush2.msra.mxu0 0.0
    %2134 = vmatprep.subr.mxu0 0.0
    %2135 = vmatpush2.msra.mxu0 0.0
    %2136 = vmatprep.subr.mxu0 0.0
    %2137 = vmatpush2.msra.mxu0 0.0
    %2138 = vmatprep.subr.mxu0 0.0
    %2139 = vmatpush2.msra.mxu0 0.0
    %2140 = vmatprep.subr.mxu0 0.0
    %2141 = vmatpush2.msra.mxu0 0.0
    %2142 = vmatprep.subr.mxu0 0.0
    %2143 = vmatpush2.msra.mxu0 0.0
    %2144 = vmatprep.subr.mxu0 0.0
    %2145 = vmatpush2.msra.mxu0 0.0
    %2146 = vmatprep.subr.mxu0 0.0
    %2147 = vmatpush2.msra.mxu0 0.0
    %2148 = vmatprep.subr.mxu0 0.0
    %2149 = vmatpush2.msra.mxu0 0.0
    %2150 = vmatprep.mubr.f32.mxu0 0.0
    %2151 = vmatmul.mubr.f32.gmra.mxu0 %v2081
    %v2152 = vpop.f32.mrf.mxu0
    %v2153 = vadd.f32 %v2077, %v2152
    %v2154 = vpop.f32.mrf.mxu0
    %2155 = vdwg.mxu0
    %vm2156 = vcmask 74752
    %2157 = vst.msk [vmem:[#allocation2] sm:$0x3] %vm2156, %v2153
    // Predicated region
    $region54: #{lenet5_forward.1} parent=1 // pred_check
      _
    $region55: #{lenet5_forward.1} parent=1 // pred_check_branch
      %2159 = sbr.rel (0) target = $region57
    $region56: #{lenet5_forward.1} parent=1 // pred_region
      %s2161 = ssub.s32 32, 32
      %2162 = vsyncadd [#allocation3], %s2161
      %s2164 = sshll.u32 [#allocation2], 4
      %s2165 = int_to_ptr.vmem [resolvable:$true] %s2164
      %2167 = dma.vmem_to_hbm [thread:$0]  %s2165, 32, %s13, [#allocation3]
    $region57: #{lenet5_forward.1} parent=1 // pred_fallthru
      _
    // Predicated region
    $region58: #{lenet5_forward.1} parent=1 // pred_check
      _
    $region59: #{lenet5_forward.1} parent=1 // pred_check_branch
      %2169 = sbr.rel (0) target = $region61
    $region60: #{lenet5_forward.1} parent=1 // pred_region
      %2170 = dma.done [#allocation3], 32
    $region61: #{lenet5_forward.1} parent=1 // pred_fallthru
      _
    %2171 = vsyncpa [#allocation3], 1

</llo_original>
